<compile_context>
chip_gen: v7x
topology: tpu7x:2x2x1
jax: 0.10.0
libtpu: 0.0.40
codegen_flags: <defaults>
</compile_context>

<pallas_src>
import jax
import jax.numpy as jnp
from jax.experimental import pallas as pl
from jax.experimental.pallas import tpu as pltpu


# ----------------------------------------------------------------------------
# Fused kernel: conv stack (3x conv+BN+LeakyReLU+pool) + final Linear
# ----------------------------------------------------------------------------
def _make_encoder_kernel(batch, seg, out_lanes):
    """batch: B, seg: S = input_dim // 8 (positions per phase), out_lanes: padded latent."""
    rows = seg * batch  # rows ordered (s, b): row = s * batch + b

    def kernel(x_ref, w1_ref, w2_ref, w3_ref, wfc_ref, out_ref):
        # masks for conv zero-padding at segment boundaries (s == 0 / s == S-1)
        row_idx = jax.lax.broadcasted_iota(jnp.int32, (rows, 1), 0)
        not_first = row_idx >= batch          # s > 0
        not_last = row_idx < rows - batch     # s < S-1

        def shift_down(a):  # a'[(s,b)] = a[(s-1,b)], zero at s == 0
            return jnp.where(not_first, jnp.roll(a, batch, axis=0), 0.0)

        def shift_up(a):    # a'[(s,b)] = a[(s+1,b)], zero at s == S-1
            return jnp.where(not_last, jnp.roll(a, -batch, axis=0), 0.0)

        def bn_lrelu_pool(y_all, n_phase, c):
            # y_all: (rows, n_phase*c) raw conv outputs, phase-major blocks of width c.
            # BatchNorm1d (train-mode batch stats, biased var, eps=1e-4) per channel,
            # statistics taken over ALL (batch, position) entries = every phase block.
            cnt = float(rows * n_phase)
            s1 = jnp.sum(y_all, axis=0, keepdims=True)            # (1, n_phase*c)
            s2 = jnp.sum(y_all * y_all, axis=0, keepdims=True)
            s1c = s1[:, 0:c]
            s2c = s2[:, 0:c]
            for q in range(1, n_phase):
                s1c = s1c + s1[:, q * c:(q + 1) * c]
                s2c = s2c + s2[:, q * c:(q + 1) * c]
            mean = s1c / cnt
            var = s2c / cnt - mean * mean
            inv = jax.lax.rsqrt(var + 1e-4)
            # MaxPool1d(2,2) commutes with the (monotonic) normalize + LeakyReLU,
            # so pool the raw streams first and normalize half as much data.
            outs = []
            for q in range(0, n_phase, 2):
                m = jnp.maximum(y_all[:, q * c:(q + 1) * c],
                                y_all[:, (q + 1) * c:(q + 2) * c])
                t = (m - mean) * inv
                outs.append(jnp.maximum(t, 0.01 * t))             # LeakyReLU(0.01)
            return outs                                           # n_phase//2 x (rows, c)

        # ---------------- layer 1: Conv1d(1 -> 32), all 8 phases in one matmul -------
        x = x_ref[...]                                            # (rows, 8), lanes = phase r
        halo = jnp.concatenate(
            [shift_down(x[:, 7:8]), x, shift_up(x[:, 0:1])], axis=1)        # (rows, 10)
        y1 = jnp.dot(halo, w1_ref[...],
                     preferred_element_type=jnp.float32)          # (rows, 8*32)
        p = bn_lrelu_pool(y1, 8, 32)                              # 4 x (rows, 32)

        # ---------------- layer 2: Conv1d(32 -> 64), one banded (192, 256) matmul ----
        cat2 = jnp.concatenate(
            [shift_down(p[3]), p[0], p[1], p[2], p[3], shift_up(p[0])], axis=1)  # (rows, 192)
        y2 = jnp.dot(cat2, w2_ref[...],
                     preferred_element_type=jnp.float32)          # (rows, 4*64)
        p = bn_lrelu_pool(y2, 4, 64)                              # 2 x (rows, 64)

        # ---------------- layer 3: Conv1d(64 -> 128), one banded (256, 256) matmul ---
        cat3 = jnp.concatenate(
            [shift_down(p[1]), p[0], p[1], shift_up(p[0])], axis=1)          # (rows, 256)
        y3 = jnp.dot(cat3, w3_ref[...],
                     preferred_element_type=jnp.float32)          # (rows, 2*128)
        h = bn_lrelu_pool(y3, 2, 128)[0]                          # (rows, 128) = (S*B, 128)

        # ---------------- fused Linear(128*S -> latent), lane-dense padded output ----
        acc = jnp.zeros((batch, out_lanes), jnp.float32)
        for s in range(seg):
            h_s = h[s * batch:(s + 1) * batch, :]                 # (B, 128), contiguous rows
            acc = acc + jnp.dot(h_s, wfc_ref[s],
                                preferred_element_type=jnp.float32)
        out_ref[...] = acc

    return kernel


# ----------------------------------------------------------------------------
# Wrapper: layout conversion + weight packing (trace-time, on constants)
# ----------------------------------------------------------------------------
def encoder_forward(x, w_conv1, w_conv2, w_conv3, w_fc):
    b, input_dim = x.shape
    assert input_dim % 8 == 0, "input_dim must be divisible by 8"
    seg = input_dim // 8                       # S = final length after 3 pools
    latent = w_fc.shape[0]
    out_lanes = ((latent + 127) // 128) * 128  # pad FC output to a multiple of 128 lanes

    # input (B, L) -> rows ordered (s, b), 8 phase columns on the lane axis
    x_in = jnp.transpose(x.reshape(b, seg, 8).astype(jnp.float32),
                         (1, 0, 2)).reshape(seg * b, 8)

    # layer-1 weight: block-banded (10, 8*32) so all 8 phases are one matmul.
    # halo column j holds phase (j-1) (j=0: phase7@s-1, j=9: phase0@s+1); output
    # phase r consumes columns r, r+1, r+2 with taps 0,1,2.
    w1taps = jnp.transpose(w_conv1[:, 0, :], (1, 0)).astype(jnp.float32)   # (3, 32) [tap, co]
    w1big = jnp.zeros((10, 8 * 32), jnp.float32)
    for r in range(8):
        w1big = w1big.at[r:r + 3, r * 32:(r + 1) * 32].set(w1taps)

    # layers 2/3: (Cout, Cin, 3) -> tap-fused (3*Cin, Cout), then block-banded so the
    # whole layer is a single matmul covering all output phases.
    w2p = jnp.transpose(w_conv2, (2, 1, 0)).reshape(3 * 32, 64).astype(jnp.float32)
    w2band = jnp.zeros((6 * 32, 4 * 64), jnp.float32)              # (192, 256)
    for q in range(4):
        w2band = w2band.at[q * 32:(q + 3) * 32, q * 64:(q + 1) * 64].set(w2p)

    w3p = jnp.transpose(w_conv3, (2, 1, 0)).reshape(3 * 64, 128).astype(jnp.float32)
    w3band = jnp.zeros((4 * 64, 2 * 128), jnp.float32)             # (256, 256)
    for u in range(2):
        w3band = w3band.at[u * 64:(u + 3) * 64, u * 128:(u + 1) * 128].set(w3p)

    # fc weight (latent, 128*S) with flat index c*S + s  ->  (S, 128, out_lanes)
    wfc = jnp.transpose(w_fc.reshape(latent, 128, seg), (2, 1, 0)).astype(jnp.float32)
    wfc = jnp.pad(wfc, ((0, 0), (0, 0), (0, out_lanes - latent)))

    rows = seg * b
    out = pl.pallas_call(
        _make_encoder_kernel(b, seg, out_lanes),
        out_shape=jax.ShapeDtypeStruct((b, out_lanes), jnp.float32),
        grid=(1,),
        in_specs=[
            pl.BlockSpec((rows, 8), lambda i: (0, 0)),
            pl.BlockSpec((10, 8 * 32), lambda i: (0, 0)),
            pl.BlockSpec((6 * 32, 4 * 64), lambda i: (0, 0)),
            pl.BlockSpec((4 * 64, 2 * 128), lambda i: (0, 0)),
            pl.BlockSpec((seg, 128, out_lanes), lambda i: (0, 0, 0)),
        ],
        out_specs=pl.BlockSpec((b, out_lanes), lambda i: (0, 0)),
        compiler_params=pltpu.CompilerParams(
            dimension_semantics=("arbitrary",),
            vmem_limit_bytes=64 * 1024 * 1024,
        ),
    )(x_in, w1big, w2band, w3band, wfc)
    return out[:, :latent]


# ----------------------------------------------------------------------------
# Pure-JAX reference (mirrors the PyTorch forward) for a correctness check
# ----------------------------------------------------------------------------
def reference_forward(x, w_conv1, w_conv2, w_conv3, w_fc):
    h = x[:, None, :]  # (B, 1, L), NCL like PyTorch

    def conv(h, w):
        return jax.lax.conv_general_dilated(
            h, w, window_strides=(1,), padding=((1, 1),),
            dimension_numbers=("NCH", "OIH", "NCH"),
            precision=jax.lax.Precision.HIGHEST)

    def bn(h):
        m = jnp.mean(h, axis=(0, 2), keepdims=True)
        v = jnp.mean((h - m) ** 2, axis=(0, 2), keepdims=True)
        return (h - m) / jnp.sqrt(v + 1e-4)

    def act_pool(h):
        h = jnp.where(h > 0, h, 0.01 * h)
        bsz, c, l = h.shape
        return jnp.max(h.reshape(bsz, c, l // 2, 2), axis=-1)

    h = act_pool(bn(conv(h, w_conv1)))
    h = act_pool(bn(conv(h, w_conv2)))
    h = act_pool(bn(conv(h, w_conv3)))
    h = h.reshape(h.shape[0], -1)
    return jnp.dot(h, w_fc.T, precision=jax.lax.Precision.HIGHEST)


# ----------------------------------------------------------------------------
if __name__ == "__main__":
    key = jax.random.PRNGKey(0)
    batch, input_dim, latent_dim = 8, 64, 32      # small; input_dim divisible by 8
    k1, k2, k3, k4, k5 = jax.random.split(key, 5)

    x = jax.random.normal(k1, (batch, input_dim), jnp.float32)
    # Deterministic synthetic parameters (shapes from the module's __init__)
    w_conv1 = 0.20 * jax.random.normal(k2, (32, 1, 3), jnp.float32)
    w_conv2 = 0.10 * jax.random.normal(k3, (64, 32, 3), jnp.float32)
    w_conv3 = 0.08 * jax.random.normal(k4, (128, 64, 3), jnp.float32)
    w_fc = 0.03 * jax.random.normal(
        k5, (latent_dim, 128 * (input_dim // 8)), jnp.float32)

    enc = jax.jit(encoder_forward)
    out = enc(x, w_conv1, w_conv2, w_conv3, w_fc)
    out = jax.block_until_ready(out)
    assert out.shape == (batch, latent_dim)

    ref = reference_forward(x, w_conv1, w_conv2, w_conv3, w_fc)
    ref = jax.block_until_ready(ref)
    if not bool(jnp.allclose(out, ref, rtol=2e-2, atol=2e-2)):
        max_err = float(jnp.max(jnp.abs(out - ref)))
        raise AssertionError(f"Pallas output mismatch vs reference, max |err| = {max_err}")

    print("KERNEL_OK")
</pallas_src>

<mosaic_0001>
module attributes {stable_mosaic.version = 11 : i64} {
  func.func @kernel(%arg0: i32, %arg1: memref<64x8xf32, #tpu.memory_space<vmem>>, %arg2: memref<10x256xf32, #tpu.memory_space<vmem>>, %arg3: memref<192x256xf32, #tpu.memory_space<vmem>>, %arg4: memref<256x256xf32, #tpu.memory_space<vmem>>, %arg5: memref<8x128x128xf32, #tpu.memory_space<vmem>>, %arg6: memref<8x128xf32, #tpu.memory_space<vmem>>) attributes {dimension_semantics = [#tpu.dimension_semantics<arbitrary>], iteration_bounds = array<i64: 1>, scalar_prefetch = 0 : i64, scratch_operands = 0 : i64, tpu.core_type = #tpu.core_type<tc>, window_params = [{pipeline_mode = #tpu.pipeline_mode<synchronous>, transform_indices = @transform_0, window_bounds = array<i64: 64, 8>}, {pipeline_mode = #tpu.pipeline_mode<synchronous>, transform_indices = @transform_1, window_bounds = array<i64: 10, 256>}, {pipeline_mode = #tpu.pipeline_mode<synchronous>, transform_indices = @transform_2, window_bounds = array<i64: 192, 256>}, {pipeline_mode = #tpu.pipeline_mode<synchronous>, transform_indices = @transform_3, window_bounds = array<i64: 256, 256>}, {pipeline_mode = #tpu.pipeline_mode<synchronous>, transform_indices = @transform_4, window_bounds = array<i64: 8, 128, 128>}, {pipeline_mode = #tpu.pipeline_mode<synchronous>, transform_indices = @transform_5, window_bounds = array<i64: 8, 128>}]} {
    %0 = tpu.iota {dimensions = array<i32: 0>} : vector<64x1xi32>
    %c8_i32 = arith.constant 8 : i32
    %1 = vector.broadcast %c8_i32 : i32 to vector<64x1xi32>
    %2 = arith.cmpi sge, %0, %1 : vector<64x1xi32>
    %c56_i32 = arith.constant 56 : i32
    %3 = vector.broadcast %c56_i32 : i32 to vector<64x1xi32>
    %4 = arith.cmpi slt, %0, %3 : vector<64x1xi32>
    %c0 = arith.constant 0 : index
    %c0_0 = arith.constant 0 : index
    %5 = vector.load %arg1[%c0, %c0_0] : memref<64x8xf32, #tpu.memory_space<vmem>>, vector<64x8xf32>
    %6 = vector.extract_strided_slice %5 {offsets = [0, 7], sizes = [64, 1], strides = [1, 1]} : vector<64x8xf32> to vector<64x1xf32>
    %7 = vector.extract_strided_slice %6 {offsets = [56, 0], sizes = [8, 1], strides = [1, 1]} : vector<64x1xf32> to vector<8x1xf32>
    %8 = vector.extract_strided_slice %6 {offsets = [0, 0], sizes = [56, 1], strides = [1, 1]} : vector<64x1xf32> to vector<56x1xf32>
    %9 = tpu.concatenate %7, %8 in 0 : vector<8x1xf32>, vector<56x1xf32> -> vector<64x1xf32>
    %cst = arith.constant 0.000000e+00 : f32
    %10 = vector.broadcast %cst : f32 to vector<64x1xf32>
    %11 = arith.select %2, %9, %10 : vector<64x1xi1>, vector<64x1xf32>
    %12 = vector.extract_strided_slice %5 {offsets = [0, 0], sizes = [64, 1], strides = [1, 1]} : vector<64x8xf32> to vector<64x1xf32>
    %13 = vector.extract_strided_slice %12 {offsets = [8, 0], sizes = [56, 1], strides = [1, 1]} : vector<64x1xf32> to vector<56x1xf32>
    %14 = vector.extract_strided_slice %12 {offsets = [0, 0], sizes = [8, 1], strides = [1, 1]} : vector<64x1xf32> to vector<8x1xf32>
    %15 = tpu.concatenate %13, %14 in 0 : vector<56x1xf32>, vector<8x1xf32> -> vector<64x1xf32>
    %cst_1 = arith.constant 0.000000e+00 : f32
    %16 = vector.broadcast %cst_1 : f32 to vector<64x1xf32>
    %17 = arith.select %4, %15, %16 : vector<64x1xi1>, vector<64x1xf32>
    %18 = tpu.concatenate %11, %5, %17 in 1 : vector<64x1xf32>, vector<64x8xf32>, vector<64x1xf32> -> vector<64x10xf32>
    %c0_2 = arith.constant 0 : index
    %c0_3 = arith.constant 0 : index
    %19 = vector.load %arg2[%c0_2, %c0_3] : memref<10x256xf32, #tpu.memory_space<vmem>>, vector<10x256xf32>
    %cst_4 = arith.constant dense<0.000000e+00> : vector<64x256xf32>
    %20 = tpu.matmul %18, %19, %cst_4 {dimension_numbers = #tpu.dot_dimension_numbers<[1], [0], [0], [1], [0, 0, 1, 1], [], []>} : vector<64x10xf32>, vector<10x256xf32>, vector<64x256xf32> -> vector<64x256xf32>
    %cst_5 = arith.constant dense<0.000000e+00> : vector<256xf32>
    %21 = vector.multi_reduction <add>, %20, %cst_5 [0] : vector<64x256xf32> to vector<256xf32>
    %22 = vector.shape_cast %21 : vector<256xf32> to vector<1x256xf32>
    %23 = arith.mulf %20, %20 : vector<64x256xf32>
    %cst_6 = arith.constant dense<0.000000e+00> : vector<256xf32>
    %24 = vector.multi_reduction <add>, %23, %cst_6 [0] : vector<64x256xf32> to vector<256xf32>
    %25 = vector.shape_cast %24 : vector<256xf32> to vector<1x256xf32>
    %26 = vector.extract_strided_slice %22 {offsets = [0, 0], sizes = [1, 32], strides = [1, 1]} : vector<1x256xf32> to vector<1x32xf32>
    %27 = vector.extract_strided_slice %25 {offsets = [0, 0], sizes = [1, 32], strides = [1, 1]} : vector<1x256xf32> to vector<1x32xf32>
    %28 = vector.extract_strided_slice %22 {offsets = [0, 32], sizes = [1, 32], strides = [1, 1]} : vector<1x256xf32> to vector<1x32xf32>
    %29 = arith.addf %26, %28 : vector<1x32xf32>
    %30 = vector.extract_strided_slice %25 {offsets = [0, 32], sizes = [1, 32], strides = [1, 1]} : vector<1x256xf32> to vector<1x32xf32>
    %31 = arith.addf %27, %30 : vector<1x32xf32>
    %32 = vector.extract_strided_slice %22 {offsets = [0, 64], sizes = [1, 32], strides = [1, 1]} : vector<1x256xf32> to vector<1x32xf32>
    %33 = arith.addf %29, %32 : vector<1x32xf32>
    %34 = vector.extract_strided_slice %25 {offsets = [0, 64], sizes = [1, 32], strides = [1, 1]} : vector<1x256xf32> to vector<1x32xf32>
    %35 = arith.addf %31, %34 : vector<1x32xf32>
    %36 = vector.extract_strided_slice %22 {offsets = [0, 96], sizes = [1, 32], strides = [1, 1]} : vector<1x256xf32> to vector<1x32xf32>
    %37 = arith.addf %33, %36 : vector<1x32xf32>
    %38 = vector.extract_strided_slice %25 {offsets = [0, 96], sizes = [1, 32], strides = [1, 1]} : vector<1x256xf32> to vector<1x32xf32>
    %39 = arith.addf %35, %38 : vector<1x32xf32>
    %40 = vector.extract_strided_slice %22 {offsets = [0, 128], sizes = [1, 32], strides = [1, 1]} : vector<1x256xf32> to vector<1x32xf32>
    %41 = arith.addf %37, %40 : vector<1x32xf32>
    %42 = vector.extract_strided_slice %25 {offsets = [0, 128], sizes = [1, 32], strides = [1, 1]} : vector<1x256xf32> to vector<1x32xf32>
    %43 = arith.addf %39, %42 : vector<1x32xf32>
    %44 = vector.extract_strided_slice %22 {offsets = [0, 160], sizes = [1, 32], strides = [1, 1]} : vector<1x256xf32> to vector<1x32xf32>
    %45 = arith.addf %41, %44 : vector<1x32xf32>
    %46 = vector.extract_strided_slice %25 {offsets = [0, 160], sizes = [1, 32], strides = [1, 1]} : vector<1x256xf32> to vector<1x32xf32>
    %47 = arith.addf %43, %46 : vector<1x32xf32>
    %48 = vector.extract_strided_slice %22 {offsets = [0, 192], sizes = [1, 32], strides = [1, 1]} : vector<1x256xf32> to vector<1x32xf32>
    %49 = arith.addf %45, %48 : vector<1x32xf32>
    %50 = vector.extract_strided_slice %25 {offsets = [0, 192], sizes = [1, 32], strides = [1, 1]} : vector<1x256xf32> to vector<1x32xf32>
    %51 = arith.addf %47, %50 : vector<1x32xf32>
    %52 = vector.extract_strided_slice %22 {offsets = [0, 224], sizes = [1, 32], strides = [1, 1]} : vector<1x256xf32> to vector<1x32xf32>
    %53 = arith.addf %49, %52 : vector<1x32xf32>
    %54 = vector.extract_strided_slice %25 {offsets = [0, 224], sizes = [1, 32], strides = [1, 1]} : vector<1x256xf32> to vector<1x32xf32>
    %55 = arith.addf %51, %54 : vector<1x32xf32>
    %cst_7 = arith.constant 5.120000e+02 : f32
    %56 = vector.broadcast %cst_7 : f32 to vector<1x32xf32>
    %57 = arith.divf %53, %56 : vector<1x32xf32>
    %cst_8 = arith.constant 5.120000e+02 : f32
    %58 = vector.broadcast %cst_8 : f32 to vector<1x32xf32>
    %59 = arith.divf %55, %58 : vector<1x32xf32>
    %60 = arith.mulf %57, %57 : vector<1x32xf32>
    %61 = arith.subf %59, %60 : vector<1x32xf32>
    %cst_9 = arith.constant 9.99999974E-5 : f32
    %62 = vector.broadcast %cst_9 : f32 to vector<1x32xf32>
    %63 = arith.addf %61, %62 : vector<1x32xf32>
    %64 = math.rsqrt %63 : vector<1x32xf32>
    %65 = vector.extract_strided_slice %20 {offsets = [0, 0], sizes = [64, 32], strides = [1, 1]} : vector<64x256xf32> to vector<64x32xf32>
    %66 = vector.extract_strided_slice %20 {offsets = [0, 32], sizes = [64, 32], strides = [1, 1]} : vector<64x256xf32> to vector<64x32xf32>
    %67 = arith.maximumf %65, %66 : vector<64x32xf32>
    %68 = vector.broadcast %57 : vector<1x32xf32> to vector<64x32xf32>
    %69 = arith.subf %67, %68 : vector<64x32xf32>
    %70 = vector.broadcast %64 : vector<1x32xf32> to vector<64x32xf32>
    %71 = arith.mulf %69, %70 : vector<64x32xf32>
    %cst_10 = arith.constant 0.00999999977 : f32
    %72 = vector.broadcast %cst_10 : f32 to vector<64x32xf32>
    %73 = arith.mulf %72, %71 : vector<64x32xf32>
    %74 = arith.maximumf %71, %73 : vector<64x32xf32>
    %75 = vector.extract_strided_slice %20 {offsets = [0, 64], sizes = [64, 32], strides = [1, 1]} : vector<64x256xf32> to vector<64x32xf32>
    %76 = vector.extract_strided_slice %20 {offsets = [0, 96], sizes = [64, 32], strides = [1, 1]} : vector<64x256xf32> to vector<64x32xf32>
    %77 = arith.maximumf %75, %76 : vector<64x32xf32>
    %78 = vector.broadcast %57 : vector<1x32xf32> to vector<64x32xf32>
    %79 = arith.subf %77, %78 : vector<64x32xf32>
    %80 = vector.broadcast %64 : vector<1x32xf32> to vector<64x32xf32>
    %81 = arith.mulf %79, %80 : vector<64x32xf32>
    %cst_11 = arith.constant 0.00999999977 : f32
    %82 = vector.broadcast %cst_11 : f32 to vector<64x32xf32>
    %83 = arith.mulf %82, %81 : vector<64x32xf32>
    %84 = arith.maximumf %81, %83 : vector<64x32xf32>
    %85 = vector.extract_strided_slice %20 {offsets = [0, 128], sizes = [64, 32], strides = [1, 1]} : vector<64x256xf32> to vector<64x32xf32>
    %86 = vector.extract_strided_slice %20 {offsets = [0, 160], sizes = [64, 32], strides = [1, 1]} : vector<64x256xf32> to vector<64x32xf32>
    %87 = arith.maximumf %85, %86 : vector<64x32xf32>
    %88 = vector.broadcast %57 : vector<1x32xf32> to vector<64x32xf32>
    %89 = arith.subf %87, %88 : vector<64x32xf32>
    %90 = vector.broadcast %64 : vector<1x32xf32> to vector<64x32xf32>
    %91 = arith.mulf %89, %90 : vector<64x32xf32>
    %cst_12 = arith.constant 0.00999999977 : f32
    %92 = vector.broadcast %cst_12 : f32 to vector<64x32xf32>
    %93 = arith.mulf %92, %91 : vector<64x32xf32>
    %94 = arith.maximumf %91, %93 : vector<64x32xf32>
    %95 = vector.extract_strided_slice %20 {offsets = [0, 192], sizes = [64, 32], strides = [1, 1]} : vector<64x256xf32> to vector<64x32xf32>
    %96 = vector.extract_strided_slice %20 {offsets = [0, 224], sizes = [64, 32], strides = [1, 1]} : vector<64x256xf32> to vector<64x32xf32>
    %97 = arith.maximumf %95, %96 : vector<64x32xf32>
    %98 = vector.broadcast %57 : vector<1x32xf32> to vector<64x32xf32>
    %99 = arith.subf %97, %98 : vector<64x32xf32>
    %100 = vector.broadcast %64 : vector<1x32xf32> to vector<64x32xf32>
    %101 = arith.mulf %99, %100 : vector<64x32xf32>
    %cst_13 = arith.constant 0.00999999977 : f32
    %102 = vector.broadcast %cst_13 : f32 to vector<64x32xf32>
    %103 = arith.mulf %102, %101 : vector<64x32xf32>
    %104 = arith.maximumf %101, %103 : vector<64x32xf32>
    %105 = vector.extract_strided_slice %104 {offsets = [56, 0], sizes = [8, 32], strides = [1, 1]} : vector<64x32xf32> to vector<8x32xf32>
    %106 = vector.extract_strided_slice %104 {offsets = [0, 0], sizes = [56, 32], strides = [1, 1]} : vector<64x32xf32> to vector<56x32xf32>
    %107 = tpu.concatenate %105, %106 in 0 : vector<8x32xf32>, vector<56x32xf32> -> vector<64x32xf32>
    %cst_14 = arith.constant 0.000000e+00 : f32
    %108 = vector.shape_cast %2 : vector<64x1xi1> to vector<64x1xi1>
    %109 = vector.broadcast %108 : vector<64x1xi1> to vector<64x32xi1>
    %110 = vector.broadcast %cst_14 : f32 to vector<64x32xf32>
    %111 = arith.select %109, %107, %110 : vector<64x32xi1>, vector<64x32xf32>
    %112 = vector.extract_strided_slice %74 {offsets = [8, 0], sizes = [56, 32], strides = [1, 1]} : vector<64x32xf32> to vector<56x32xf32>
    %113 = vector.extract_strided_slice %74 {offsets = [0, 0], sizes = [8, 32], strides = [1, 1]} : vector<64x32xf32> to vector<8x32xf32>
    %114 = tpu.concatenate %112, %113 in 0 : vector<56x32xf32>, vector<8x32xf32> -> vector<64x32xf32>
    %cst_15 = arith.constant 0.000000e+00 : f32
    %115 = vector.shape_cast %4 : vector<64x1xi1> to vector<64x1xi1>
    %116 = vector.broadcast %115 : vector<64x1xi1> to vector<64x32xi1>
    %117 = vector.broadcast %cst_15 : f32 to vector<64x32xf32>
    %118 = arith.select %116, %114, %117 : vector<64x32xi1>, vector<64x32xf32>
    %119 = tpu.concatenate %111, %74, %84, %94, %104, %118 in 1 : vector<64x32xf32>, vector<64x32xf32>, vector<64x32xf32>, vector<64x32xf32>, vector<64x32xf32>, vector<64x32xf32> -> vector<64x192xf32>
    %c0_16 = arith.constant 0 : index
    %c0_17 = arith.constant 0 : index
    %120 = vector.load %arg3[%c0_16, %c0_17] : memref<192x256xf32, #tpu.memory_space<vmem>>, vector<192x256xf32>
    %cst_18 = arith.constant dense<0.000000e+00> : vector<64x256xf32>
    %121 = tpu.matmul %119, %120, %cst_18 {dimension_numbers = #tpu.dot_dimension_numbers<[1], [0], [0], [1], [0, 0, 1, 1], [], []>} : vector<64x192xf32>, vector<192x256xf32>, vector<64x256xf32> -> vector<64x256xf32>
    %cst_19 = arith.constant dense<0.000000e+00> : vector<256xf32>
    %122 = vector.multi_reduction <add>, %121, %cst_19 [0] : vector<64x256xf32> to vector<256xf32>
    %123 = vector.shape_cast %122 : vector<256xf32> to vector<1x256xf32>
    %124 = arith.mulf %121, %121 : vector<64x256xf32>
    %cst_20 = arith.constant dense<0.000000e+00> : vector<256xf32>
    %125 = vector.multi_reduction <add>, %124, %cst_20 [0] : vector<64x256xf32> to vector<256xf32>
    %126 = vector.shape_cast %125 : vector<256xf32> to vector<1x256xf32>
    %127 = vector.extract_strided_slice %123 {offsets = [0, 0], sizes = [1, 64], strides = [1, 1]} : vector<1x256xf32> to vector<1x64xf32>
    %128 = vector.extract_strided_slice %126 {offsets = [0, 0], sizes = [1, 64], strides = [1, 1]} : vector<1x256xf32> to vector<1x64xf32>
    %129 = vector.extract_strided_slice %123 {offsets = [0, 64], sizes = [1, 64], strides = [1, 1]} : vector<1x256xf32> to vector<1x64xf32>
    %130 = arith.addf %127, %129 : vector<1x64xf32>
    %131 = vector.extract_strided_slice %126 {offsets = [0, 64], sizes = [1, 64], strides = [1, 1]} : vector<1x256xf32> to vector<1x64xf32>
    %132 = arith.addf %128, %131 : vector<1x64xf32>
    %133 = vector.extract_strided_slice %123 {offsets = [0, 128], sizes = [1, 64], strides = [1, 1]} : vector<1x256xf32> to vector<1x64xf32>
    %134 = arith.addf %130, %133 : vector<1x64xf32>
    %135 = vector.extract_strided_slice %126 {offsets = [0, 128], sizes = [1, 64], strides = [1, 1]} : vector<1x256xf32> to vector<1x64xf32>
    %136 = arith.addf %132, %135 : vector<1x64xf32>
    %137 = vector.extract_strided_slice %123 {offsets = [0, 192], sizes = [1, 64], strides = [1, 1]} : vector<1x256xf32> to vector<1x64xf32>
    %138 = arith.addf %134, %137 : vector<1x64xf32>
    %139 = vector.extract_strided_slice %126 {offsets = [0, 192], sizes = [1, 64], strides = [1, 1]} : vector<1x256xf32> to vector<1x64xf32>
    %140 = arith.addf %136, %139 : vector<1x64xf32>
    %cst_21 = arith.constant 2.560000e+02 : f32
    %141 = vector.broadcast %cst_21 : f32 to vector<1x64xf32>
    %142 = arith.divf %138, %141 : vector<1x64xf32>
    %cst_22 = arith.constant 2.560000e+02 : f32
    %143 = vector.broadcast %cst_22 : f32 to vector<1x64xf32>
    %144 = arith.divf %140, %143 : vector<1x64xf32>
    %145 = arith.mulf %142, %142 : vector<1x64xf32>
    %146 = arith.subf %144, %145 : vector<1x64xf32>
    %cst_23 = arith.constant 9.99999974E-5 : f32
    %147 = vector.broadcast %cst_23 : f32 to vector<1x64xf32>
    %148 = arith.addf %146, %147 : vector<1x64xf32>
    %149 = math.rsqrt %148 : vector<1x64xf32>
    %150 = vector.extract_strided_slice %121 {offsets = [0, 0], sizes = [64, 64], strides = [1, 1]} : vector<64x256xf32> to vector<64x64xf32>
    %151 = vector.extract_strided_slice %121 {offsets = [0, 64], sizes = [64, 64], strides = [1, 1]} : vector<64x256xf32> to vector<64x64xf32>
    %152 = arith.maximumf %150, %151 : vector<64x64xf32>
    %153 = vector.broadcast %142 : vector<1x64xf32> to vector<64x64xf32>
    %154 = arith.subf %152, %153 : vector<64x64xf32>
    %155 = vector.broadcast %149 : vector<1x64xf32> to vector<64x64xf32>
    %156 = arith.mulf %154, %155 : vector<64x64xf32>
    %cst_24 = arith.constant 0.00999999977 : f32
    %157 = vector.broadcast %cst_24 : f32 to vector<64x64xf32>
    %158 = arith.mulf %157, %156 : vector<64x64xf32>
    %159 = arith.maximumf %156, %158 : vector<64x64xf32>
    %160 = vector.extract_strided_slice %121 {offsets = [0, 128], sizes = [64, 64], strides = [1, 1]} : vector<64x256xf32> to vector<64x64xf32>
    %161 = vector.extract_strided_slice %121 {offsets = [0, 192], sizes = [64, 64], strides = [1, 1]} : vector<64x256xf32> to vector<64x64xf32>
    %162 = arith.maximumf %160, %161 : vector<64x64xf32>
    %163 = vector.broadcast %142 : vector<1x64xf32> to vector<64x64xf32>
    %164 = arith.subf %162, %163 : vector<64x64xf32>
    %165 = vector.broadcast %149 : vector<1x64xf32> to vector<64x64xf32>
    %166 = arith.mulf %164, %165 : vector<64x64xf32>
    %cst_25 = arith.constant 0.00999999977 : f32
    %167 = vector.broadcast %cst_25 : f32 to vector<64x64xf32>
    %168 = arith.mulf %167, %166 : vector<64x64xf32>
    %169 = arith.maximumf %166, %168 : vector<64x64xf32>
    %170 = vector.extract_strided_slice %169 {offsets = [56, 0], sizes = [8, 64], strides = [1, 1]} : vector<64x64xf32> to vector<8x64xf32>
    %171 = vector.extract_strided_slice %169 {offsets = [0, 0], sizes = [56, 64], strides = [1, 1]} : vector<64x64xf32> to vector<56x64xf32>
    %172 = tpu.concatenate %170, %171 in 0 : vector<8x64xf32>, vector<56x64xf32> -> vector<64x64xf32>
    %cst_26 = arith.constant 0.000000e+00 : f32
    %173 = vector.shape_cast %2 : vector<64x1xi1> to vector<64x1xi1>
    %174 = vector.broadcast %173 : vector<64x1xi1> to vector<64x64xi1>
    %175 = vector.broadcast %cst_26 : f32 to vector<64x64xf32>
    %176 = arith.select %174, %172, %175 : vector<64x64xi1>, vector<64x64xf32>
    %177 = vector.extract_strided_slice %159 {offsets = [8, 0], sizes = [56, 64], strides = [1, 1]} : vector<64x64xf32> to vector<56x64xf32>
    %178 = vector.extract_strided_slice %159 {offsets = [0, 0], sizes = [8, 64], strides = [1, 1]} : vector<64x64xf32> to vector<8x64xf32>
    %179 = tpu.concatenate %177, %178 in 0 : vector<56x64xf32>, vector<8x64xf32> -> vector<64x64xf32>
    %cst_27 = arith.constant 0.000000e+00 : f32
    %180 = vector.shape_cast %4 : vector<64x1xi1> to vector<64x1xi1>
    %181 = vector.broadcast %180 : vector<64x1xi1> to vector<64x64xi1>
    %182 = vector.broadcast %cst_27 : f32 to vector<64x64xf32>
    %183 = arith.select %181, %179, %182 : vector<64x64xi1>, vector<64x64xf32>
    %184 = tpu.concatenate %176, %159, %169, %183 in 1 : vector<64x64xf32>, vector<64x64xf32>, vector<64x64xf32>, vector<64x64xf32> -> vector<64x256xf32>
    %c0_28 = arith.constant 0 : index
    %c0_29 = arith.constant 0 : index
    %185 = vector.load %arg4[%c0_28, %c0_29] : memref<256x256xf32, #tpu.memory_space<vmem>>, vector<256x256xf32>
    %cst_30 = arith.constant dense<0.000000e+00> : vector<64x256xf32>
    %186 = tpu.matmul %184, %185, %cst_30 {dimension_numbers = #tpu.dot_dimension_numbers<[1], [0], [0], [1], [0, 0, 1, 1], [], []>} : vector<64x256xf32>, vector<256x256xf32>, vector<64x256xf32> -> vector<64x256xf32>
    %cst_31 = arith.constant dense<0.000000e+00> : vector<256xf32>
    %187 = vector.multi_reduction <add>, %186, %cst_31 [0] : vector<64x256xf32> to vector<256xf32>
    %188 = vector.shape_cast %187 : vector<256xf32> to vector<1x256xf32>
    %189 = arith.mulf %186, %186 : vector<64x256xf32>
    %cst_32 = arith.constant dense<0.000000e+00> : vector<256xf32>
    %190 = vector.multi_reduction <add>, %189, %cst_32 [0] : vector<64x256xf32> to vector<256xf32>
    %191 = vector.shape_cast %190 : vector<256xf32> to vector<1x256xf32>
    %192 = vector.extract_strided_slice %188 {offsets = [0, 0], sizes = [1, 128], strides = [1, 1]} : vector<1x256xf32> to vector<1x128xf32>
    %193 = vector.extract_strided_slice %191 {offsets = [0, 0], sizes = [1, 128], strides = [1, 1]} : vector<1x256xf32> to vector<1x128xf32>
    %194 = vector.extract_strided_slice %188 {offsets = [0, 128], sizes = [1, 128], strides = [1, 1]} : vector<1x256xf32> to vector<1x128xf32>
    %195 = arith.addf %192, %194 : vector<1x128xf32>
    %196 = vector.extract_strided_slice %191 {offsets = [0, 128], sizes = [1, 128], strides = [1, 1]} : vector<1x256xf32> to vector<1x128xf32>
    %197 = arith.addf %193, %196 : vector<1x128xf32>
    %cst_33 = arith.constant 1.280000e+02 : f32
    %198 = vector.broadcast %cst_33 : f32 to vector<1x128xf32>
    %199 = arith.divf %195, %198 : vector<1x128xf32>
    %cst_34 = arith.constant 1.280000e+02 : f32
    %200 = vector.broadcast %cst_34 : f32 to vector<1x128xf32>
    %201 = arith.divf %197, %200 : vector<1x128xf32>
    %202 = arith.mulf %199, %199 : vector<1x128xf32>
    %203 = arith.subf %201, %202 : vector<1x128xf32>
    %cst_35 = arith.constant 9.99999974E-5 : f32
    %204 = vector.broadcast %cst_35 : f32 to vector<1x128xf32>
    %205 = arith.addf %203, %204 : vector<1x128xf32>
    %206 = math.rsqrt %205 : vector<1x128xf32>
    %207 = vector.extract_strided_slice %186 {offsets = [0, 0], sizes = [64, 128], strides = [1, 1]} : vector<64x256xf32> to vector<64x128xf32>
    %208 = vector.extract_strided_slice %186 {offsets = [0, 128], sizes = [64, 128], strides = [1, 1]} : vector<64x256xf32> to vector<64x128xf32>
    %209 = arith.maximumf %207, %208 : vector<64x128xf32>
    %210 = vector.broadcast %199 : vector<1x128xf32> to vector<64x128xf32>
    %211 = arith.subf %209, %210 : vector<64x128xf32>
    %212 = vector.broadcast %206 : vector<1x128xf32> to vector<64x128xf32>
    %213 = arith.mulf %211, %212 : vector<64x128xf32>
    %cst_36 = arith.constant 0.00999999977 : f32
    %214 = vector.broadcast %cst_36 : f32 to vector<64x128xf32>
    %215 = arith.mulf %214, %213 : vector<64x128xf32>
    %216 = arith.maximumf %213, %215 : vector<64x128xf32>
    %cst_37 = arith.constant 0.000000e+00 : f32
    %217 = vector.broadcast %cst_37 : f32 to vector<8x128xf32>
    %218 = vector.extract_strided_slice %216 {offsets = [0, 0], sizes = [8, 128], strides = [1, 1]} : vector<64x128xf32> to vector<8x128xf32>
    %c0_38 = arith.constant 0 : index
    %c0_39 = arith.constant 0 : index
    %c0_40 = arith.constant 0 : index
    %219 = vector.load %arg5[%c0_38, %c0_39, %c0_40] : memref<8x128x128xf32, #tpu.memory_space<vmem>>, vector<1x128x128xf32>
    %220 = vector.shape_cast %219 : vector<1x128x128xf32> to vector<128x128xf32>
    %cst_41 = arith.constant dense<0.000000e+00> : vector<8x128xf32>
    %221 = tpu.matmul %218, %220, %cst_41 {dimension_numbers = #tpu.dot_dimension_numbers<[1], [0], [0], [1], [0, 0, 1, 1], [], []>} : vector<8x128xf32>, vector<128x128xf32>, vector<8x128xf32> -> vector<8x128xf32>
    %222 = arith.addf %217, %221 : vector<8x128xf32>
    %223 = vector.extract_strided_slice %216 {offsets = [8, 0], sizes = [8, 128], strides = [1, 1]} : vector<64x128xf32> to vector<8x128xf32>
    %c1 = arith.constant 1 : index
    %c0_42 = arith.constant 0 : index
    %c0_43 = arith.constant 0 : index
    %224 = vector.load %arg5[%c1, %c0_42, %c0_43] : memref<8x128x128xf32, #tpu.memory_space<vmem>>, vector<1x128x128xf32>
    %225 = vector.shape_cast %224 : vector<1x128x128xf32> to vector<128x128xf32>
    %cst_44 = arith.constant dense<0.000000e+00> : vector<8x128xf32>
    %226 = tpu.matmul %223, %225, %cst_44 {dimension_numbers = #tpu.dot_dimension_numbers<[1], [0], [0], [1], [0, 0, 1, 1], [], []>} : vector<8x128xf32>, vector<128x128xf32>, vector<8x128xf32> -> vector<8x128xf32>
    %227 = arith.addf %222, %226 : vector<8x128xf32>
    %228 = vector.extract_strided_slice %216 {offsets = [16, 0], sizes = [8, 128], strides = [1, 1]} : vector<64x128xf32> to vector<8x128xf32>
    %c2 = arith.constant 2 : index
    %c0_45 = arith.constant 0 : index
    %c0_46 = arith.constant 0 : index
    %229 = vector.load %arg5[%c2, %c0_45, %c0_46] : memref<8x128x128xf32, #tpu.memory_space<vmem>>, vector<1x128x128xf32>
    %230 = vector.shape_cast %229 : vector<1x128x128xf32> to vector<128x128xf32>
    %cst_47 = arith.constant dense<0.000000e+00> : vector<8x128xf32>
    %231 = tpu.matmul %228, %230, %cst_47 {dimension_numbers = #tpu.dot_dimension_numbers<[1], [0], [0], [1], [0, 0, 1, 1], [], []>} : vector<8x128xf32>, vector<128x128xf32>, vector<8x128xf32> -> vector<8x128xf32>
    %232 = arith.addf %227, %231 : vector<8x128xf32>
    %233 = vector.extract_strided_slice %216 {offsets = [24, 0], sizes = [8, 128], strides = [1, 1]} : vector<64x128xf32> to vector<8x128xf32>
    %c3 = arith.constant 3 : index
    %c0_48 = arith.constant 0 : index
    %c0_49 = arith.constant 0 : index
    %234 = vector.load %arg5[%c3, %c0_48, %c0_49] : memref<8x128x128xf32, #tpu.memory_space<vmem>>, vector<1x128x128xf32>
    %235 = vector.shape_cast %234 : vector<1x128x128xf32> to vector<128x128xf32>
    %cst_50 = arith.constant dense<0.000000e+00> : vector<8x128xf32>
    %236 = tpu.matmul %233, %235, %cst_50 {dimension_numbers = #tpu.dot_dimension_numbers<[1], [0], [0], [1], [0, 0, 1, 1], [], []>} : vector<8x128xf32>, vector<128x128xf32>, vector<8x128xf32> -> vector<8x128xf32>
    %237 = arith.addf %232, %236 : vector<8x128xf32>
    %238 = vector.extract_strided_slice %216 {offsets = [32, 0], sizes = [8, 128], strides = [1, 1]} : vector<64x128xf32> to vector<8x128xf32>
    %c4 = arith.constant 4 : index
    %c0_51 = arith.constant 0 : index
    %c0_52 = arith.constant 0 : index
    %239 = vector.load %arg5[%c4, %c0_51, %c0_52] : memref<8x128x128xf32, #tpu.memory_space<vmem>>, vector<1x128x128xf32>
    %240 = vector.shape_cast %239 : vector<1x128x128xf32> to vector<128x128xf32>
    %cst_53 = arith.constant dense<0.000000e+00> : vector<8x128xf32>
    %241 = tpu.matmul %238, %240, %cst_53 {dimension_numbers = #tpu.dot_dimension_numbers<[1], [0], [0], [1], [0, 0, 1, 1], [], []>} : vector<8x128xf32>, vector<128x128xf32>, vector<8x128xf32> -> vector<8x128xf32>
    %242 = arith.addf %237, %241 : vector<8x128xf32>
    %243 = vector.extract_strided_slice %216 {offsets = [40, 0], sizes = [8, 128], strides = [1, 1]} : vector<64x128xf32> to vector<8x128xf32>
    %c5 = arith.constant 5 : index
    %c0_54 = arith.constant 0 : index
    %c0_55 = arith.constant 0 : index
    %244 = vector.load %arg5[%c5, %c0_54, %c0_55] : memref<8x128x128xf32, #tpu.memory_space<vmem>>, vector<1x128x128xf32>
    %245 = vector.shape_cast %244 : vector<1x128x128xf32> to vector<128x128xf32>
    %cst_56 = arith.constant dense<0.000000e+00> : vector<8x128xf32>
    %246 = tpu.matmul %243, %245, %cst_56 {dimension_numbers = #tpu.dot_dimension_numbers<[1], [0], [0], [1], [0, 0, 1, 1], [], []>} : vector<8x128xf32>, vector<128x128xf32>, vector<8x128xf32> -> vector<8x128xf32>
    %247 = arith.addf %242, %246 : vector<8x128xf32>
    %248 = vector.extract_strided_slice %216 {offsets = [48, 0], sizes = [8, 128], strides = [1, 1]} : vector<64x128xf32> to vector<8x128xf32>
    %c6 = arith.constant 6 : index
    %c0_57 = arith.constant 0 : index
    %c0_58 = arith.constant 0 : index
    %249 = vector.load %arg5[%c6, %c0_57, %c0_58] : memref<8x128x128xf32, #tpu.memory_space<vmem>>, vector<1x128x128xf32>
    %250 = vector.shape_cast %249 : vector<1x128x128xf32> to vector<128x128xf32>
    %cst_59 = arith.constant dense<0.000000e+00> : vector<8x128xf32>
    %251 = tpu.matmul %248, %250, %cst_59 {dimension_numbers = #tpu.dot_dimension_numbers<[1], [0], [0], [1], [0, 0, 1, 1], [], []>} : vector<8x128xf32>, vector<128x128xf32>, vector<8x128xf32> -> vector<8x128xf32>
    %252 = arith.addf %247, %251 : vector<8x128xf32>
    %253 = vector.extract_strided_slice %216 {offsets = [56, 0], sizes = [8, 128], strides = [1, 1]} : vector<64x128xf32> to vector<8x128xf32>
    %c7 = arith.constant 7 : index
    %c0_60 = arith.constant 0 : index
    %c0_61 = arith.constant 0 : index
    %254 = vector.load %arg5[%c7, %c0_60, %c0_61] : memref<8x128x128xf32, #tpu.memory_space<vmem>>, vector<1x128x128xf32>
    %255 = vector.shape_cast %254 : vector<1x128x128xf32> to vector<128x128xf32>
    %cst_62 = arith.constant dense<0.000000e+00> : vector<8x128xf32>
    %256 = tpu.matmul %253, %255, %cst_62 {dimension_numbers = #tpu.dot_dimension_numbers<[1], [0], [0], [1], [0, 0, 1, 1], [], []>} : vector<8x128xf32>, vector<128x128xf32>, vector<8x128xf32> -> vector<8x128xf32>
    %257 = arith.addf %252, %256 : vector<8x128xf32>
    %c0_63 = arith.constant 0 : index
    %c0_64 = arith.constant 0 : index
    %258 = vector.load %arg6[%c0_63, %c0_64] : memref<8x128xf32, #tpu.memory_space<vmem>>, vector<8x128xf32>
    tpu.vector_store %arg6[%c0_63, %c0_64], %257 {strides = array<i32>} : memref<8x128xf32, #tpu.memory_space<vmem>>, vector<8x128xf32>,
    return
  }
  func.func @transform_0(%arg0: i32) -> (i32, i32) {
    %c0_i32 = arith.constant 0 : i32
    %c0_i32_0 = arith.constant 0 : i32
    %c0_i32_1 = arith.constant 0 : i32
    return %c0_i32, %c0_i32_0 : i32, i32
  }
  func.func @transform_1(%arg0: i32) -> (i32, i32) {
    %c0_i32 = arith.constant 0 : i32
    %c0_i32_0 = arith.constant 0 : i32
    %c0_i32_1 = arith.constant 0 : i32
    return %c0_i32, %c0_i32_0 : i32, i32
  }
  func.func @transform_2(%arg0: i32) -> (i32, i32) {
    %c0_i32 = arith.constant 0 : i32
    %c0_i32_0 = arith.constant 0 : i32
    %c0_i32_1 = arith.constant 0 : i32
    return %c0_i32, %c0_i32_0 : i32, i32
  }
  func.func @transform_3(%arg0: i32) -> (i32, i32) {
    %c0_i32 = arith.constant 0 : i32
    %c0_i32_0 = arith.constant 0 : i32
    %c0_i32_1 = arith.constant 0 : i32
    return %c0_i32, %c0_i32_0 : i32, i32
  }
  func.func @transform_4(%arg0: i32) -> (i32, i32, i32) {
    %c0_i32 = arith.constant 0 : i32
    %c0_i32_0 = arith.constant 0 : i32
    %c0_i32_1 = arith.constant 0 : i32
    %c0_i32_2 = arith.constant 0 : i32
    return %c0_i32, %c0_i32_0, %c0_i32_1 : i32, i32, i32
  }
  func.func @transform_5(%arg0: i32) -> (i32, i32) {
    %c0_i32 = arith.constant 0 : i32
    %c0_i32_0 = arith.constant 0 : i32
    %c0_i32_1 = arith.constant 0 : i32
    return %c0_i32, %c0_i32_0 : i32, i32
  }
}

</mosaic_0001>

<llo_original>
// kernel: encoder_forward.1
$region0: #{encoder_forward.1}
  #allocation0 [shape = 'u32[]', space=smem, size = 0x4, offset = 0x4, fixed_abs, tag = 'smem constant byte address 0x4 - core index']
  #allocation1 [shape = 'u32[144,128]{1,0:T(1,128)}', space=vmem, size = 0x12000, scoped, tag = 'internal scratch']
  %s0 = inlined_call_operand.hbm [shape: f32[64,8], index: 0, kind: input, shape index: {}]
  %s1 = inlined_call_operand.hbm [shape: f32[10,256], index: 1, kind: input, shape index: {}]
  %s2 = inlined_call_operand.hbm [shape: f32[192,256], index: 2, kind: input, shape index: {}]
  %s3 = inlined_call_operand.hbm [shape: f32[256,256], index: 3, kind: input, shape index: {}]
  %s4 = inlined_call_operand.hbm [shape: f32[8,128,128], index: 4, kind: input, shape index: {}]
  %s5 = inlined_call_operand.hbm [shape: f32[8,128], index: 5, kind: output, shape index: {}]
  %s6 = sld [smem:[#allocation0]]
  $region50: #{encoder_forward.1} parent=0
    _
  %s8 = ssub.s32 1, %s6
  %s9 = scalar_select 0, %s8, %s6
  $region1: #{encoder_forward.1} parent=0
    #allocation2 [shape = 'u8[32768]{0}', space=vmem, size = 0x8000, scoped, tag = 'input window, operand 0, single buffered']
    #allocation3 [shape = 's32[1]{0}', space=sflag, size = 0x4, scoped, tag = 'scoped memory for encoder_forward.1']
    #allocation4 [shape = 's32[1]{0}', space=sflag, size = 0x4, scoped, tag = 'scoped memory for encoder_forward.1']
    #allocation5 [shape = 'u8[16384]{0}', space=vmem, size = 0x4000, scoped, tag = 'input window, operand 1, single buffered']
    #allocation6 [shape = 's32[1]{0}', space=sflag, size = 0x4, scoped, tag = 'scoped memory for encoder_forward.1']
    #allocation7 [shape = 'u8[196608]{0}', space=vmem, size = 0x30000, scoped, tag = 'input window, operand 2, single buffered']
    #allocation8 [shape = 'u8[262144]{0}', space=vmem, size = 0x40000, scoped, tag = 'input window, operand 3, single buffered']
    #allocation9 [shape = 's32[1]{0}', space=sflag, size = 0x4, scoped, tag = 'scoped memory for encoder_forward.1']
    #allocation10 [shape = 'u8[524288]{0}', space=vmem, size = 0x80000, scoped, tag = 'input window, operand 4, single buffered']
    #allocation11 [shape = 'u8[4096]{0}', space=vmem, size = 0x1000, scoped, tag = 'output window, operand 0, single buffered']
    %10 = vsyncpa [#allocation3], 0
    %11 = vsyncpa [#allocation6], 0
    %12 = vsyncpa [#allocation9], 0
    %13 = vsyncpa [#allocation4], 0
    // Predicated region
    $region2: #{encoder_forward.1} parent=1 // pred_check
      _
    $region3: #{encoder_forward.1} parent=1 // pred_check_branch
      %15 = sbr.rel (0) target = $region5
    $region4: #{encoder_forward.1} parent=1 // pred_region
      %s17 = ssub.s32 1024, 1024
      %18 = vsyncadd [#allocation3], %s17
      %s19 = sshll.u32 [#allocation2], 4
      %s20 = int_to_ptr.vmem [resolvable:$true] %s19
      %25 = dma.hbm_to_vmem [thread:$0]  %s0, 1024, %s20, [#allocation3], 128, 128, 8
    $region5: #{encoder_forward.1} parent=1 // pred_fallthru
      _
    // Predicated region
    $region6: #{encoder_forward.1} parent=1 // pred_check
      _
    $region7: #{encoder_forward.1} parent=1 // pred_check_branch
      %27 = sbr.rel (0) target = $region9
    $region8: #{encoder_forward.1} parent=1 // pred_region
      %s29 = ssub.s32 512, 512
      %30 = vsyncadd [#allocation6], %s29
      %s31 = sshll.u32 [#allocation5], 4
      %s32 = int_to_ptr.vmem [resolvable:$true] %s31
      %37 = dma.hbm_to_vmem [thread:$0]  %s1, 512, %s32, [#allocation6], 256, 256, 16
    $region9: #{encoder_forward.1} parent=1 // pred_fallthru
      _
    // Predicated region
    $region10: #{encoder_forward.1} parent=1 // pred_check
      _
    $region11: #{encoder_forward.1} parent=1 // pred_check_branch
      %39 = sbr.rel (0) target = $region13
    $region12: #{encoder_forward.1} parent=1 // pred_region
      %s41 = ssub.s32 6144, 6144
      %42 = vsyncadd [#allocation6], %s41
      %s43 = sshll.u32 [#allocation7], 4
      %s44 = int_to_ptr.vmem [resolvable:$true] %s43
      %49 = dma.hbm_to_vmem [thread:$0]  %s2, 6144, %s44, [#allocation6], 256, 256, 16
    $region13: #{encoder_forward.1} parent=1 // pred_fallthru
      _
    // Predicated region
    $region14: #{encoder_forward.1} parent=1 // pred_check
      _
    $region15: #{encoder_forward.1} parent=1 // pred_check_branch
      %51 = sbr.rel (0) target = $region17
    $region16: #{encoder_forward.1} parent=1 // pred_region
      %s53 = ssub.s32 8192, 8192
      %54 = vsyncadd [#allocation9], %s53
      %s55 = sshll.u32 [#allocation8], 4
      %s56 = int_to_ptr.vmem [resolvable:$true] %s55
      %61 = dma.hbm_to_vmem [thread:$0]  %s3, 8192, %s56, [#allocation9], 256, 256, 16
    $region17: #{encoder_forward.1} parent=1 // pred_fallthru
      _
    // Predicated region
    $region18: #{encoder_forward.1} parent=1 // pred_check
      _
    $region19: #{encoder_forward.1} parent=1 // pred_check_branch
      %63 = sbr.rel (0) target = $region21
    $region20: #{encoder_forward.1} parent=1 // pred_region
      %s65 = ssub.s32 16384, 16384
      %66 = vsyncadd [#allocation9], %s65
      %s67 = sshll.u32 [#allocation10], 4
      %s68 = int_to_ptr.vmem [resolvable:$true] %s67
      %73 = dma.hbm_to_vmem [thread:$0]  %s4, 16384, %s68, [#allocation9], 128, 128, 8
    $region21: #{encoder_forward.1} parent=1 // pred_fallthru
      _
    // Predicated region
    $region22: #{encoder_forward.1} parent=1 // pred_check
      _
    $region23: #{encoder_forward.1} parent=1 // pred_check_branch
      %75 = sbr.rel (0) target = $region25
    $region24: #{encoder_forward.1} parent=1 // pred_region
      %76 = dma.done [#allocation3], 1024
    $region25: #{encoder_forward.1} parent=1 // pred_fallthru
      _
    // Predicated region
    $region26: #{encoder_forward.1} parent=1 // pred_check
      _
    $region27: #{encoder_forward.1} parent=1 // pred_check_branch
      %78 = sbr.rel (0) target = $region29
    $region28: #{encoder_forward.1} parent=1 // pred_region
      %79 = dma.done [#allocation6], 512
    $region29: #{encoder_forward.1} parent=1 // pred_fallthru
      _
    // Predicated region
    $region30: #{encoder_forward.1} parent=1 // pred_check
      _
    $region31: #{encoder_forward.1} parent=1 // pred_check_branch
      %81 = sbr.rel (0) target = $region33
    $region32: #{encoder_forward.1} parent=1 // pred_region
      %82 = dma.done [#allocation6], 6144
    $region33: #{encoder_forward.1} parent=1 // pred_fallthru
      _
    // Predicated region
    $region34: #{encoder_forward.1} parent=1 // pred_check
      _
    $region35: #{encoder_forward.1} parent=1 // pred_check_branch
      %84 = sbr.rel (0) target = $region37
    $region36: #{encoder_forward.1} parent=1 // pred_region
      %85 = dma.done [#allocation9], 8192
    $region37: #{encoder_forward.1} parent=1 // pred_fallthru
      _
    // Predicated region
    $region38: #{encoder_forward.1} parent=1 // pred_check
      _
    $region39: #{encoder_forward.1} parent=1 // pred_check_branch
      %87 = sbr.rel (0) target = $region41
    $region40: #{encoder_forward.1} parent=1 // pred_region
      %88 = dma.done [#allocation9], 16384
    $region41: #{encoder_forward.1} parent=1 // pred_fallthru
      _
    %v89 = vlaneseq
    %v90 = vshrl.u32 %v89, 7
    %v91 = vadd.s32 %v90, 8
    %v92 = vadd.s32 %v90, 16
    %v93 = vadd.s32 %v90, 24
    %v94 = vadd.s32 %v90, 32
    %v95 = vadd.s32 %v90, 40
    %v96 = vadd.s32 %v90, 48
    %v97 = vadd.s32 %v90, 56
    %vm98 = vcmp.ge.s32.totalorder %v90, 8
    %vm99 = vcmp.ge.s32.totalorder %v91, 8
    %vm100 = vcmp.ge.s32.totalorder %v92, 8
    %vm101 = vcmp.ge.s32.totalorder %v93, 8
    %vm102 = vcmp.ge.s32.totalorder %v94, 8
    %vm103 = vcmp.ge.s32.totalorder %v95, 8
    %vm104 = vcmp.ge.s32.totalorder %v96, 8
    %vm105 = vcmp.ge.s32.totalorder %v97, 8
    %vm106 = vcmp.lt.s32.totalorder %v90, 56
    %vm107 = vcmp.lt.s32.totalorder %v91, 56
    %vm108 = vcmp.lt.s32.totalorder %v92, 56
    %vm109 = vcmp.lt.s32.totalorder %v93, 56
    %vm110 = vcmp.lt.s32.totalorder %v94, 56
    %vm111 = vcmp.lt.s32.totalorder %v95, 56
    %vm112 = vcmp.lt.s32.totalorder %v96, 56
    %vm113 = vcmp.lt.s32.totalorder %v97, 56
    %v114 = vld [vmem:[#allocation2] sm:$0xff]
    %v115 = vld [vmem:[#allocation2 + $0x8] sm:$0xff]
    %v116 = vld [vmem:[#allocation2 + $0x10] sm:$0xff]
    %v117 = vld [vmem:[#allocation2 + $0x18] sm:$0xff]
    %v118 = vld [vmem:[#allocation2 + $0x20] sm:$0xff]
    %v119 = vld [vmem:[#allocation2 + $0x28] sm:$0xff]
    %v120 = vld [vmem:[#allocation2 + $0x30] sm:$0xff]
    %v121 = vld [vmem:[#allocation2 + $0x38] sm:$0xff]
    %v122 = vsel %vm98, %v121, 0.0
    %v123 = vsel %vm99, %v114, 0.0
    %v124 = vsel %vm100, %v115, 0.0
    %v125 = vsel %vm101, %v116, 0.0
    %v126 = vsel %vm102, %v117, 0.0
    %v127 = vsel %vm103, %v118, 0.0
    %v128 = vsel %vm104, %v119, 0.0
    %v129 = vsel %vm105, %v120, 0.0
    %v130 = vsel %vm106, %v115, 0.0
    %v131 = vsel %vm107, %v116, 0.0
    %v132 = vsel %vm108, %v117, 0.0
    %v133 = vsel %vm109, %v118, 0.0
    %v134 = vsel %vm110, %v119, 0.0
    %v135 = vsel %vm111, %v120, 0.0
    %v136 = vsel %vm112, %v121, 0.0
    %v137 = vsel %vm113, %v114, 0.0
    %146 = vrot.lane.b32.xlu0 %v122, 121
    %v147 = vpop.permute.xlu0 %146
    %148 = vrot.lane.b32.xlu0 %v123, 121
    %v149 = vpop.permute.xlu0 %148
    %150 = vrot.lane.b32.xlu0 %v124, 121
    %v151 = vpop.permute.xlu0 %150
    %152 = vrot.lane.b32.xlu0 %v125, 121
    %v153 = vpop.permute.xlu0 %152
    %154 = vrot.lane.b32.xlu0 %v126, 121
    %v155 = vpop.permute.xlu0 %154
    %156 = vrot.lane.b32.xlu0 %v127, 121
    %v157 = vpop.permute.xlu0 %156
    %158 = vrot.lane.b32.xlu0 %v128, 121
    %v159 = vpop.permute.xlu0 %158
    %160 = vrot.lane.b32.xlu0 %v129, 121
    %v161 = vpop.permute.xlu0 %160
    %178 = vrot.lane.b32.xlu0 %v114, 1
    %v179 = vpop.permute.xlu0 %178
    %180 = vrot.lane.b32.xlu0 %v115, 1
    %v181 = vpop.permute.xlu0 %180
    %182 = vrot.lane.b32.xlu0 %v116, 1
    %v183 = vpop.permute.xlu0 %182
    %184 = vrot.lane.b32.xlu0 %v117, 1
    %v185 = vpop.permute.xlu0 %184
    %186 = vrot.lane.b32.xlu0 %v118, 1
    %v187 = vpop.permute.xlu0 %186
    %188 = vrot.lane.b32.xlu0 %v119, 1
    %v189 = vpop.permute.xlu0 %188
    %190 = vrot.lane.b32.xlu0 %v120, 1
    %v191 = vpop.permute.xlu0 %190
    %192 = vrot.lane.b32.xlu0 %v121, 1
    %v193 = vpop.permute.xlu0 %192
    %210 = vrot.lane.b32.xlu0 %v130, 9
    %v211 = vpop.permute.xlu0 %210
    %212 = vrot.lane.b32.xlu0 %v131, 9
    %v213 = vpop.permute.xlu0 %212
    %214 = vrot.lane.b32.xlu0 %v132, 9
    %v215 = vpop.permute.xlu0 %214
    %216 = vrot.lane.b32.xlu0 %v133, 9
    %v217 = vpop.permute.xlu0 %216
    %218 = vrot.lane.b32.xlu0 %v134, 9
    %v219 = vpop.permute.xlu0 %218
    %220 = vrot.lane.b32.xlu0 %v135, 9
    %v221 = vpop.permute.xlu0 %220
    %222 = vrot.lane.b32.xlu0 %v136, 9
    %v223 = vpop.permute.xlu0 %222
    %224 = vrot.lane.b32.xlu0 %v137, 9
    %v225 = vpop.permute.xlu0 %224
    %vm234 = vcmask 7168
    %v235 = vsel %vm234, %v147, %v179
    %v236 = vsel %vm234, %v149, %v181
    %v237 = vsel %vm234, %v151, %v183
    %v238 = vsel %vm234, %v153, %v185
    %v239 = vsel %vm234, %v155, %v187
    %v240 = vsel %vm234, %v157, %v189
    %v241 = vsel %vm234, %v159, %v191
    %v242 = vsel %vm234, %v161, %v193
    %vm243 = vcmask 72704
    %v244 = vsel %vm243, %v235, %v211
    %v245 = vsel %vm243, %v236, %v213
    %v246 = vsel %vm243, %v237, %v215
    %v247 = vsel %vm243, %v238, %v217
    %v248 = vsel %vm243, %v239, %v219
    %v249 = vsel %vm243, %v240, %v221
    %v250 = vsel %vm243, %v241, %v223
    %v251 = vsel %vm243, %v242, %v225
    %v252 = vld [vmem:[#allocation5] sm:$0xff]
    %v253 = vld [vmem:[#allocation5 + $0x8] sm:$0xff]
    %v254 = vld [vmem:[#allocation5 + $0x10] sm:$0x3]
    %v255 = vld [vmem:[#allocation5 + $0x18] sm:$0x3]
    %vm256 = vcmask 80896
    %v258 = vsel %vm256, %v244, 0
    %v261 = vsel %vm256, %v245, 0
    %v264 = vsel %vm256, %v246, 0
    %v267 = vsel %vm256, %v247, 0
    %v270 = vsel %vm256, %v248, 0
    %v273 = vsel %vm256, %v249, 0
    %v276 = vsel %vm256, %v250, 0
    %v279 = vsel %vm256, %v251, 0
    %vm281 = vcmask 1041408
    %v283 = vsel %vm281, %v254, 0
    %v286 = vsel %vm281, %v255, 0
    %288 = vmatprep.subr.mxu0 %v253
    %289 = vmatpush1.msra.mxu0 %v252
    %290 = vmatprep.subr.mxu0 %v286
    %291 = vmatpush1.msra.mxu0 %v283
    %292 = vmatprep.subr.mxu0 0.0
    %293 = vmatpush1.msra.mxu0 0.0
    %294 = vmatprep.subr.mxu0 0.0
    %295 = vmatpush1.msra.mxu0 0.0
    %296 = vmatprep.subr.mxu0 0.0
    %297 = vmatpush1.msra.mxu0 0.0
    %298 = vmatprep.subr.mxu0 0.0
    %299 = vmatpush1.msra.mxu0 0.0
    %300 = vmatprep.subr.mxu0 0.0
    %301 = vmatpush1.msra.mxu0 0.0
    %302 = vmatprep.subr.mxu0 0.0
    %303 = vmatpush1.msra.mxu0 0.0
    %304 = vmatprep.subr.mxu0 0.0
    %305 = vmatpush1.msra.mxu0 0.0
    %306 = vmatprep.subr.mxu0 0.0
    %307 = vmatpush1.msra.mxu0 0.0
    %308 = vmatprep.subr.mxu0 0.0
    %309 = vmatpush1.msra.mxu0 0.0
    %310 = vmatprep.subr.mxu0 0.0
    %311 = vmatpush1.msra.mxu0 0.0
    %312 = vmatprep.subr.mxu0 0.0
    %313 = vmatpush1.msra.mxu0 0.0
    %314 = vmatprep.subr.mxu0 0.0
    %315 = vmatpush1.msra.mxu0 0.0
    %316 = vmatprep.subr.mxu0 0.0
    %317 = vmatpush1.msra.mxu0 0.0
    %318 = vmatprep.subr.mxu0 0.0
    %319 = vmatpush1.msra.mxu0 0.0
    %320 = vmatprep.subr.mxu0 0.0
    %321 = vmatpush1.msra.mxu0 0.0
    %322 = vmatprep.subr.mxu0 0.0
    %323 = vmatpush1.msra.mxu0 0.0
    %324 = vmatprep.subr.mxu0 0.0
    %325 = vmatpush1.msra.mxu0 0.0
    %326 = vmatprep.subr.mxu0 0.0
    %327 = vmatpush1.msra.mxu0 0.0
    %328 = vmatprep.subr.mxu0 0.0
    %329 = vmatpush1.msra.mxu0 0.0
    %330 = vmatprep.subr.mxu0 0.0
    %331 = vmatpush1.msra.mxu0 0.0
    %332 = vmatprep.subr.mxu0 0.0
    %333 = vmatpush1.msra.mxu0 0.0
    %334 = vmatprep.subr.mxu0 0.0
    %335 = vmatpush1.msra.mxu0 0.0
    %336 = vmatprep.subr.mxu0 0.0
    %337 = vmatpush1.msra.mxu0 0.0
    %338 = vmatprep.subr.mxu0 0.0
    %339 = vmatpush1.msra.mxu0 0.0
    %340 = vmatprep.subr.mxu0 0.0
    %341 = vmatpush1.msra.mxu0 0.0
    %342 = vmatprep.subr.mxu0 0.0
    %343 = vmatpush1.msra.mxu0 0.0
    %344 = vmatprep.subr.mxu0 0.0
    %345 = vmatpush1.msra.mxu0 0.0
    %346 = vmatprep.subr.mxu0 0.0
    %347 = vmatpush1.msra.mxu0 0.0
    %348 = vmatprep.subr.mxu0 0.0
    %349 = vmatpush1.msra.mxu0 0.0
    %350 = vmatprep.subr.mxu0 0.0
    %351 = vmatpush1.msra.mxu0 0.0
    %352 = vmatprep.mubr.f32.mxu0 0.0
    %353 = vmatmul.mubr.f32.gmra.mrb[0].mxu0 %v258
    %v354 = vpop.f32.mrb[0].mxu0
    %v355 = vadd.f32 0.0, %v354
    %v356 = vpop.f32.mrb[0].mxu0
    %v357 = vadd.f32 0.0, %v356
    %358 = vmatprep.mubr.f32.mxu0 0.0
    %359 = vmatmul.mubr.f32.gmra.mrb[0].mxu0 %v261
    %v360 = vpop.f32.mrb[0].mxu0
    %v361 = vadd.f32 0.0, %v360
    %v362 = vpop.f32.mrb[0].mxu0
    %v363 = vadd.f32 0.0, %v362
    %364 = vmatprep.mubr.f32.mxu0 0.0
    %365 = vmatmul.mubr.f32.gmra.mrb[0].mxu0 %v264
    %v366 = vpop.f32.mrb[0].mxu0
    %v367 = vadd.f32 0.0, %v366
    %v368 = vpop.f32.mrb[0].mxu0
    %v369 = vadd.f32 0.0, %v368
    %370 = vmatprep.mubr.f32.mxu0 0.0
    %371 = vmatmul.mubr.f32.gmra.mrb[0].mxu0 %v267
    %v372 = vpop.f32.mrb[0].mxu0
    %v373 = vadd.f32 0.0, %v372
    %v374 = vpop.f32.mrb[0].mxu0
    %v375 = vadd.f32 0.0, %v374
    %376 = vmatprep.mubr.f32.mxu0 0.0
    %377 = vmatmul.mubr.f32.gmra.mrb[0].mxu0 %v270
    %v378 = vpop.f32.mrb[0].mxu0
    %v379 = vadd.f32 0.0, %v378
    %v380 = vpop.f32.mrb[0].mxu0
    %v381 = vadd.f32 0.0, %v380
    %382 = vmatprep.mubr.f32.mxu0 0.0
    %383 = vmatmul.mubr.f32.gmra.mrb[0].mxu0 %v273
    %v384 = vpop.f32.mrb[0].mxu0
    %v385 = vadd.f32 0.0, %v384
    %v386 = vpop.f32.mrb[0].mxu0
    %v387 = vadd.f32 0.0, %v386
    %388 = vmatprep.mubr.f32.mxu0 0.0
    %389 = vmatmul.mubr.f32.gmra.mrb[0].mxu0 %v276
    %v390 = vpop.f32.mrb[0].mxu0
    %v391 = vadd.f32 0.0, %v390
    %v392 = vpop.f32.mrb[0].mxu0
    %v393 = vadd.f32 0.0, %v392
    %394 = vmatprep.mubr.f32.mxu0 0.0
    %395 = vmatmul.mubr.f32.gmra.mrb[0].mxu0 %v279
    %v396 = vpop.f32.mrb[0].mxu0
    %v397 = vadd.f32 0.0, %v396
    %v398 = vpop.f32.mrb[0].mxu0
    %v399 = vadd.f32 0.0, %v398
    %400 = vdwg.mxu0
    %v401 = vadd.f32 %v355, %v361
    %v402 = vadd.f32 %v401, %v367
    %v403 = vadd.f32 %v402, %v373
    %v404 = vadd.f32 %v403, %v379
    %v405 = vadd.f32 %v404, %v385
    %v406 = vadd.f32 %v405, %v391
    %v407 = vadd.f32 %v406, %v397
    %v408 = vrot.slane %v407, 4
    %v409 = vadd.f32 %v407, %v408
    %v410 = vrot.slane %v409, 2
    %v411 = vadd.f32 %v409, %v410
    %v412 = vrot.slane %v411, 1
    %v413 = vadd.f32 %v411, %v412
    %v414 = vadd.f32 %v357, %v363
    %v415 = vadd.f32 %v414, %v369
    %v416 = vadd.f32 %v415, %v375
    %v417 = vadd.f32 %v416, %v381
    %v418 = vadd.f32 %v417, %v387
    %v419 = vadd.f32 %v418, %v393
    %v420 = vadd.f32 %v419, %v399
    %v421 = vrot.slane %v420, 4
    %v422 = vadd.f32 %v420, %v421
    %v423 = vrot.slane %v422, 2
    %v424 = vadd.f32 %v422, %v423
    %v425 = vrot.slane %v424, 1
    %v426 = vadd.f32 %v424, %v425
    %v427 = vmul.f32 %v355, %v355
    %v428 = vmul.f32 %v357, %v357
    %v429 = vmul.f32 %v361, %v361
    %v430 = vmul.f32 %v363, %v363
    %v431 = vmul.f32 %v367, %v367
    %v432 = vmul.f32 %v369, %v369
    %v433 = vmul.f32 %v373, %v373
    %v434 = vmul.f32 %v375, %v375
    %v435 = vmul.f32 %v379, %v379
    %v436 = vmul.f32 %v381, %v381
    %v437 = vmul.f32 %v385, %v385
    %v438 = vmul.f32 %v387, %v387
    %v439 = vmul.f32 %v391, %v391
    %v440 = vmul.f32 %v393, %v393
    %v441 = vmul.f32 %v397, %v397
    %v442 = vmul.f32 %v399, %v399
    %v443 = vadd.f32 %v427, %v429
    %v444 = vadd.f32 %v443, %v431
    %v445 = vadd.f32 %v444, %v433
    %v446 = vadd.f32 %v445, %v435
    %v447 = vadd.f32 %v446, %v437
    %v448 = vadd.f32 %v447, %v439
    %v449 = vadd.f32 %v448, %v441
    %v450 = vrot.slane %v449, 4
    %v451 = vadd.f32 %v449, %v450
    %v452 = vrot.slane %v451, 2
    %v453 = vadd.f32 %v451, %v452
    %v454 = vrot.slane %v453, 1
    %v455 = vadd.f32 %v453, %v454
    %v456 = vadd.f32 %v428, %v430
    %v457 = vadd.f32 %v456, %v432
    %v458 = vadd.f32 %v457, %v434
    %v459 = vadd.f32 %v458, %v436
    %v460 = vadd.f32 %v459, %v438
    %v461 = vadd.f32 %v460, %v440
    %v462 = vadd.f32 %v461, %v442
    %v463 = vrot.slane %v462, 4
    %v464 = vadd.f32 %v462, %v463
    %v465 = vrot.slane %v464, 2
    %v466 = vadd.f32 %v464, %v465
    %v467 = vrot.slane %v466, 1
    %v468 = vadd.f32 %v466, %v467
    %470 = vrot.lane.b32.xlu0 %v413, 96
    %v471 = vpop.permute.xlu0 %470
    %v473 = vadd.f32 %v413, %v471
    %475 = vrot.lane.b32.xlu0 %v455, 96
    %v476 = vpop.permute.xlu0 %475
    %v478 = vadd.f32 %v455, %v476
    %479 = vrot.lane.b32.xlu0 %v413, 64
    %v480 = vpop.permute.xlu0 %479
    %v482 = vadd.f32 %v473, %v480
    %483 = vrot.lane.b32.xlu0 %v455, 64
    %v484 = vpop.permute.xlu0 %483
    %v486 = vadd.f32 %v478, %v484
    %487 = vrot.lane.b32.xlu0 %v413, 32
    %v488 = vpop.permute.xlu0 %487
    %v490 = vadd.f32 %v482, %v488
    %491 = vrot.lane.b32.xlu0 %v455, 32
    %v492 = vpop.permute.xlu0 %491
    %v494 = vadd.f32 %v486, %v492
    %v495 = vadd.f32 %v490, %v426
    %v496 = vadd.f32 %v494, %v468
    %498 = vrot.lane.b32.xlu0 %v426, 96
    %v499 = vpop.permute.xlu0 %498
    %v501 = vadd.f32 %v495, %v499
    %503 = vrot.lane.b32.xlu0 %v468, 96
    %v504 = vpop.permute.xlu0 %503
    %v506 = vadd.f32 %v496, %v504
    %507 = vrot.lane.b32.xlu0 %v426, 64
    %v508 = vpop.permute.xlu0 %507
    %v510 = vadd.f32 %v501, %v508
    %511 = vrot.lane.b32.xlu0 %v468, 64
    %v512 = vpop.permute.xlu0 %511
    %v514 = vadd.f32 %v506, %v512
    %515 = vrot.lane.b32.xlu0 %v426, 32
    %v516 = vpop.permute.xlu0 %515
    %v518 = vadd.f32 %v510, %v516
    %519 = vrot.lane.b32.xlu0 %v468, 32
    %v520 = vpop.permute.xlu0 %519
    %v522 = vadd.f32 %v514, %v520
    %v523 = vrcp.pop 512.0
    %v524 = vmul.f32 %v518, %v523
    %v525 = vmul.f32 %v522, %v523
    %v526 = vmul.f32 %v524, %v524
    %v527 = vsub.f32 %v525, %v526
    %v528 = vadd.f32 %v527, 0.0001
    %v529 = vrsqrt.pop %v528
    %538 = vrot.lane.b32.xlu0 %v355, 96
    %v539 = vpop.permute.xlu0 %538
    %540 = vrot.lane.b32.xlu0 %v361, 96
    %v541 = vpop.permute.xlu0 %540
    %542 = vrot.lane.b32.xlu0 %v367, 96
    %v543 = vpop.permute.xlu0 %542
    %544 = vrot.lane.b32.xlu0 %v373, 96
    %v545 = vpop.permute.xlu0 %544
    %546 = vrot.lane.b32.xlu0 %v379, 96
    %v547 = vpop.permute.xlu0 %546
    %548 = vrot.lane.b32.xlu0 %v385, 96
    %v549 = vpop.permute.xlu0 %548
    %550 = vrot.lane.b32.xlu0 %v391, 96
    %v551 = vpop.permute.xlu0 %550
    %552 = vrot.lane.b32.xlu0 %v397, 96
    %v553 = vpop.permute.xlu0 %552
    %v562 = vmax.f32 %v355, %v539
    %v563 = vmax.f32 %v361, %v541
    %v564 = vmax.f32 %v367, %v543
    %v565 = vmax.f32 %v373, %v545
    %v566 = vmax.f32 %v379, %v547
    %v567 = vmax.f32 %v385, %v549
    %v568 = vmax.f32 %v391, %v551
    %v569 = vmax.f32 %v397, %v553
    %v570 = vlaneseq
    %v571 = vshrl.u32 %v570, 7
    %v572 = vsub.s32 0, %v571
    %v573 = vrot.slane %v524, %v572
    %v574 = vsub.f32 %v562, %v573
    %v575 = vsub.f32 %v563, %v573
    %v576 = vsub.f32 %v564, %v573
    %v577 = vsub.f32 %v565, %v573
    %v578 = vsub.f32 %v566, %v573
    %v579 = vsub.f32 %v567, %v573
    %v580 = vsub.f32 %v568, %v573
    %v581 = vsub.f32 %v569, %v573
    %v582 = vlaneseq
    %v583 = vshrl.u32 %v582, 7
    %v584 = vsub.s32 0, %v583
    %v585 = vrot.slane %v529, %v584
    %v586 = vmul.f32 %v574, %v585
    %v587 = vmul.f32 %v575, %v585
    %v588 = vmul.f32 %v576, %v585
    %v589 = vmul.f32 %v577, %v585
    %v590 = vmul.f32 %v578, %v585
    %v591 = vmul.f32 %v579, %v585
    %v592 = vmul.f32 %v580, %v585
    %v593 = vmul.f32 %v581, %v585
    %v594 = vmul.f32 %v586, 0.01
    %v595 = vmul.f32 %v587, 0.01
    %v596 = vmul.f32 %v588, 0.01
    %v597 = vmul.f32 %v589, 0.01
    %v598 = vmul.f32 %v590, 0.01
    %v599 = vmul.f32 %v591, 0.01
    %v600 = vmul.f32 %v592, 0.01
    %v601 = vmul.f32 %v593, 0.01
    %v602 = vmax.f32 %v586, %v594
    %v603 = vmax.f32 %v587, %v595
    %v604 = vmax.f32 %v588, %v596
    %v605 = vmax.f32 %v589, %v597
    %v606 = vmax.f32 %v590, %v598
    %v607 = vmax.f32 %v591, %v599
    %v608 = vmax.f32 %v592, %v600
    %v609 = vmax.f32 %v593, %v601
    %611 = vrot.lane.b32.xlu0 %v573, 64
    %v612 = vpop.permute.xlu0 %611
    %v614 = vsub.f32 %v562, %v612
    %v615 = vsub.f32 %v563, %v612
    %v616 = vsub.f32 %v564, %v612
    %v617 = vsub.f32 %v565, %v612
    %v618 = vsub.f32 %v566, %v612
    %v619 = vsub.f32 %v567, %v612
    %v620 = vsub.f32 %v568, %v612
    %v621 = vsub.f32 %v569, %v612
    %623 = vrot.lane.b32.xlu0 %v585, 64
    %v624 = vpop.permute.xlu0 %623
    %v626 = vmul.f32 %v614, %v624
    %v627 = vmul.f32 %v615, %v624
    %v628 = vmul.f32 %v616, %v624
    %v629 = vmul.f32 %v617, %v624
    %v630 = vmul.f32 %v618, %v624
    %v631 = vmul.f32 %v619, %v624
    %v632 = vmul.f32 %v620, %v624
    %v633 = vmul.f32 %v621, %v624
    %v634 = vmul.f32 %v626, 0.01
    %v635 = vmul.f32 %v627, 0.01
    %v636 = vmul.f32 %v628, 0.01
    %v637 = vmul.f32 %v629, 0.01
    %v638 = vmul.f32 %v630, 0.01
    %v639 = vmul.f32 %v631, 0.01
    %v640 = vmul.f32 %v632, 0.01
    %v641 = vmul.f32 %v633, 0.01
    %v642 = vmax.f32 %v626, %v634
    %v643 = vmax.f32 %v627, %v635
    %v644 = vmax.f32 %v628, %v636
    %v645 = vmax.f32 %v629, %v637
    %v646 = vmax.f32 %v630, %v638
    %v647 = vmax.f32 %v631, %v639
    %v648 = vmax.f32 %v632, %v640
    %v649 = vmax.f32 %v633, %v641
    %658 = vrot.lane.b32.xlu0 %v357, 96
    %v659 = vpop.permute.xlu0 %658
    %660 = vrot.lane.b32.xlu0 %v363, 96
    %v661 = vpop.permute.xlu0 %660
    %662 = vrot.lane.b32.xlu0 %v369, 96
    %v663 = vpop.permute.xlu0 %662
    %664 = vrot.lane.b32.xlu0 %v375, 96
    %v665 = vpop.permute.xlu0 %664
    %666 = vrot.lane.b32.xlu0 %v381, 96
    %v667 = vpop.permute.xlu0 %666
    %668 = vrot.lane.b32.xlu0 %v387, 96
    %v669 = vpop.permute.xlu0 %668
    %670 = vrot.lane.b32.xlu0 %v393, 96
    %v671 = vpop.permute.xlu0 %670
    %672 = vrot.lane.b32.xlu0 %v399, 96
    %v673 = vpop.permute.xlu0 %672
    %v682 = vmax.f32 %v357, %v659
    %v683 = vmax.f32 %v363, %v661
    %v684 = vmax.f32 %v369, %v663
    %v685 = vmax.f32 %v375, %v665
    %v686 = vmax.f32 %v381, %v667
    %v687 = vmax.f32 %v387, %v669
    %v688 = vmax.f32 %v393, %v671
    %v689 = vmax.f32 %v399, %v673
    %v690 = vsub.f32 %v682, %v573
    %v691 = vsub.f32 %v683, %v573
    %v692 = vsub.f32 %v684, %v573
    %v693 = vsub.f32 %v685, %v573
    %v694 = vsub.f32 %v686, %v573
    %v695 = vsub.f32 %v687, %v573
    %v696 = vsub.f32 %v688, %v573
    %v697 = vsub.f32 %v689, %v573
    %v698 = vmul.f32 %v690, %v585
    %v699 = vmul.f32 %v691, %v585
    %v700 = vmul.f32 %v692, %v585
    %v701 = vmul.f32 %v693, %v585
    %v702 = vmul.f32 %v694, %v585
    %v703 = vmul.f32 %v695, %v585
    %v704 = vmul.f32 %v696, %v585
    %v705 = vmul.f32 %v697, %v585
    %v706 = vmul.f32 %v698, 0.01
    %v707 = vmul.f32 %v699, 0.01
    %v708 = vmul.f32 %v700, 0.01
    %v709 = vmul.f32 %v701, 0.01
    %v710 = vmul.f32 %v702, 0.01
    %v711 = vmul.f32 %v703, 0.01
    %v712 = vmul.f32 %v704, 0.01
    %v713 = vmul.f32 %v705, 0.01
    %v714 = vmax.f32 %v698, %v706
    %v715 = vmax.f32 %v699, %v707
    %v716 = vmax.f32 %v700, %v708
    %v717 = vmax.f32 %v701, %v709
    %v718 = vmax.f32 %v702, %v710
    %v719 = vmax.f32 %v703, %v711
    %v720 = vmax.f32 %v704, %v712
    %v721 = vmax.f32 %v705, %v713
    %v722 = vsub.f32 %v682, %v612
    %v723 = vsub.f32 %v683, %v612
    %v724 = vsub.f32 %v684, %v612
    %v725 = vsub.f32 %v685, %v612
    %v726 = vsub.f32 %v686, %v612
    %v727 = vsub.f32 %v687, %v612
    %v728 = vsub.f32 %v688, %v612
    %v729 = vsub.f32 %v689, %v612
    %v730 = vmul.f32 %v722, %v624
    %v731 = vmul.f32 %v723, %v624
    %v732 = vmul.f32 %v724, %v624
    %v733 = vmul.f32 %v725, %v624
    %v734 = vmul.f32 %v726, %v624
    %v735 = vmul.f32 %v727, %v624
    %v736 = vmul.f32 %v728, %v624
    %v737 = vmul.f32 %v729, %v624
    %v738 = vmul.f32 %v730, 0.01
    %v739 = vmul.f32 %v731, 0.01
    %v740 = vmul.f32 %v732, 0.01
    %v741 = vmul.f32 %v733, 0.01
    %v742 = vmul.f32 %v734, 0.01
    %v743 = vmul.f32 %v735, 0.01
    %v744 = vmul.f32 %v736, 0.01
    %v745 = vmul.f32 %v737, 0.01
    %v746 = vmax.f32 %v730, %v738
    %v747 = vmax.f32 %v731, %v739
    %v748 = vmax.f32 %v732, %v740
    %v749 = vmax.f32 %v733, %v741
    %v750 = vmax.f32 %v734, %v742
    %v751 = vmax.f32 %v735, %v743
    %v752 = vmax.f32 %v736, %v744
    %v753 = vmax.f32 %v737, %v745
    %v754 = vsel %vm98, 1, 0
    %v755 = vsel %vm99, 1, 0
    %v756 = vsel %vm100, 1, 0
    %v757 = vsel %vm101, 1, 0
    %v758 = vsel %vm102, 1, 0
    %v759 = vsel %vm103, 1, 0
    %v760 = vsel %vm104, 1, 0
    %v761 = vsel %vm105, 1, 0
    %vm762 = vcmp.eq.s32.totalorder %v754, 1
    %vm763 = vcmp.eq.s32.totalorder %v755, 1
    %vm764 = vcmp.eq.s32.totalorder %v756, 1
    %vm765 = vcmp.eq.s32.totalorder %v757, 1
    %vm766 = vcmp.eq.s32.totalorder %v758, 1
    %vm767 = vcmp.eq.s32.totalorder %v759, 1
    %vm768 = vcmp.eq.s32.totalorder %v760, 1
    %vm769 = vcmp.eq.s32.totalorder %v761, 1
    %v770 = vsel %vm762, %v753, 0.0
    %v771 = vsel %vm763, %v746, 0.0
    %v772 = vsel %vm764, %v747, 0.0
    %v773 = vsel %vm765, %v748, 0.0
    %v774 = vsel %vm766, %v749, 0.0
    %v775 = vsel %vm767, %v750, 0.0
    %v776 = vsel %vm768, %v751, 0.0
    %v777 = vsel %vm769, %v752, 0.0
    %v778 = vsel %vm106, 1, 0
    %v779 = vsel %vm107, 1, 0
    %v780 = vsel %vm108, 1, 0
    %v781 = vsel %vm109, 1, 0
    %v782 = vsel %vm110, 1, 0
    %v783 = vsel %vm111, 1, 0
    %v784 = vsel %vm112, 1, 0
    %v785 = vsel %vm113, 1, 0
    %vm786 = vcmp.eq.s32.totalorder %v778, 1
    %vm787 = vcmp.eq.s32.totalorder %v779, 1
    %vm788 = vcmp.eq.s32.totalorder %v780, 1
    %vm789 = vcmp.eq.s32.totalorder %v781, 1
    %vm790 = vcmp.eq.s32.totalorder %v782, 1
    %vm791 = vcmp.eq.s32.totalorder %v783, 1
    %vm792 = vcmp.eq.s32.totalorder %v784, 1
    %vm793 = vcmp.eq.s32.totalorder %v785, 1
    %v794 = vsel %vm786, %v603, 0.0
    %v795 = vsel %vm787, %v604, 0.0
    %v796 = vsel %vm788, %v605, 0.0
    %v797 = vsel %vm789, %v606, 0.0
    %v798 = vsel %vm790, %v607, 0.0
    %v799 = vsel %vm791, %v608, 0.0
    %v800 = vsel %vm792, %v609, 0.0
    %v801 = vsel %vm793, %v602, 0.0
    %810 = vrot.lane.b32.xlu0 %v770, 64
    %v811 = vpop.permute.xlu0 %810
    %812 = vrot.lane.b32.xlu0 %v771, 64
    %v813 = vpop.permute.xlu0 %812
    %814 = vrot.lane.b32.xlu0 %v772, 64
    %v815 = vpop.permute.xlu0 %814
    %816 = vrot.lane.b32.xlu0 %v773, 64
    %v817 = vpop.permute.xlu0 %816
    %818 = vrot.lane.b32.xlu0 %v774, 64
    %v819 = vpop.permute.xlu0 %818
    %820 = vrot.lane.b32.xlu0 %v775, 64
    %v821 = vpop.permute.xlu0 %820
    %822 = vrot.lane.b32.xlu0 %v776, 64
    %v823 = vpop.permute.xlu0 %822
    %824 = vrot.lane.b32.xlu0 %v777, 64
    %v825 = vpop.permute.xlu0 %824
    %842 = vrot.lane.b32.xlu0 %v602, 32
    %v843 = vpop.permute.xlu0 %842
    %844 = vrot.lane.b32.xlu0 %v603, 32
    %v845 = vpop.permute.xlu0 %844
    %846 = vrot.lane.b32.xlu0 %v604, 32
    %v847 = vpop.permute.xlu0 %846
    %848 = vrot.lane.b32.xlu0 %v605, 32
    %v849 = vpop.permute.xlu0 %848
    %850 = vrot.lane.b32.xlu0 %v606, 32
    %v851 = vpop.permute.xlu0 %850
    %852 = vrot.lane.b32.xlu0 %v607, 32
    %v853 = vpop.permute.xlu0 %852
    %854 = vrot.lane.b32.xlu0 %v608, 32
    %v855 = vpop.permute.xlu0 %854
    %856 = vrot.lane.b32.xlu0 %v609, 32
    %v857 = vpop.permute.xlu0 %856
    %874 = vrot.lane.b32.xlu0 %v714, 96
    %v875 = vpop.permute.xlu0 %874
    %876 = vrot.lane.b32.xlu0 %v715, 96
    %v877 = vpop.permute.xlu0 %876
    %878 = vrot.lane.b32.xlu0 %v716, 96
    %v879 = vpop.permute.xlu0 %878
    %880 = vrot.lane.b32.xlu0 %v717, 96
    %v881 = vpop.permute.xlu0 %880
    %882 = vrot.lane.b32.xlu0 %v718, 96
    %v883 = vpop.permute.xlu0 %882
    %884 = vrot.lane.b32.xlu0 %v719, 96
    %v885 = vpop.permute.xlu0 %884
    %886 = vrot.lane.b32.xlu0 %v720, 96
    %v887 = vpop.permute.xlu0 %886
    %888 = vrot.lane.b32.xlu0 %v721, 96
    %v889 = vpop.permute.xlu0 %888
    %906 = vrot.lane.b32.xlu0 %v746, 64
    %v907 = vpop.permute.xlu0 %906
    %908 = vrot.lane.b32.xlu0 %v747, 64
    %v909 = vpop.permute.xlu0 %908
    %910 = vrot.lane.b32.xlu0 %v748, 64
    %v911 = vpop.permute.xlu0 %910
    %912 = vrot.lane.b32.xlu0 %v749, 64
    %v913 = vpop.permute.xlu0 %912
    %914 = vrot.lane.b32.xlu0 %v750, 64
    %v915 = vpop.permute.xlu0 %914
    %916 = vrot.lane.b32.xlu0 %v751, 64
    %v917 = vpop.permute.xlu0 %916
    %918 = vrot.lane.b32.xlu0 %v752, 64
    %v919 = vpop.permute.xlu0 %918
    %920 = vrot.lane.b32.xlu0 %v753, 64
    %v921 = vpop.permute.xlu0 %920
    %938 = vrot.lane.b32.xlu0 %v794, 32
    %v939 = vpop.permute.xlu0 %938
    %940 = vrot.lane.b32.xlu0 %v795, 32
    %v941 = vpop.permute.xlu0 %940
    %942 = vrot.lane.b32.xlu0 %v796, 32
    %v943 = vpop.permute.xlu0 %942
    %944 = vrot.lane.b32.xlu0 %v797, 32
    %v945 = vpop.permute.xlu0 %944
    %946 = vrot.lane.b32.xlu0 %v798, 32
    %v947 = vpop.permute.xlu0 %946
    %948 = vrot.lane.b32.xlu0 %v799, 32
    %v949 = vpop.permute.xlu0 %948
    %950 = vrot.lane.b32.xlu0 %v800, 32
    %v951 = vpop.permute.xlu0 %950
    %952 = vrot.lane.b32.xlu0 %v801, 32
    %v953 = vpop.permute.xlu0 %952
    %vm962 = vcmask 261120
    %v963 = vsel %vm962, %v811, %v843
    %v964 = vsel %vm962, %v813, %v845
    %v965 = vsel %vm962, %v815, %v847
    %v966 = vsel %vm962, %v817, %v849
    %v967 = vsel %vm962, %v819, %v851
    %v968 = vsel %vm962, %v821, %v853
    %v969 = vsel %vm962, %v823, %v855
    %v970 = vsel %vm962, %v825, %v857
    %vm971 = vcmask 523264
    %v972 = vsel %vm971, %v963, %v642
    %v973 = vsel %vm971, %v964, %v643
    %v974 = vsel %vm971, %v965, %v644
    %v975 = vsel %vm971, %v966, %v645
    %v976 = vsel %vm971, %v967, %v646
    %v977 = vsel %vm971, %v968, %v647
    %v978 = vsel %vm971, %v969, %v648
    %v979 = vsel %vm971, %v970, %v649
    %vm980 = vcmask 785408
    %v981 = vsel %vm980, %v972, %v875
    %v982 = vsel %vm980, %v973, %v877
    %v983 = vsel %vm980, %v974, %v879
    %v984 = vsel %vm980, %v975, %v881
    %v985 = vsel %vm980, %v976, %v883
    %v986 = vsel %vm980, %v977, %v885
    %v987 = vsel %vm980, %v978, %v887
    %v988 = vsel %vm980, %v979, %v889
    %v989 = vsel %vm962, %v907, %v939
    %v990 = vsel %vm962, %v909, %v941
    %v991 = vsel %vm962, %v911, %v943
    %v992 = vsel %vm962, %v913, %v945
    %v993 = vsel %vm962, %v915, %v947
    %v994 = vsel %vm962, %v917, %v949
    %v995 = vsel %vm962, %v919, %v951
    %v996 = vsel %vm962, %v921, %v953
    %v997 = vld [vmem:[#allocation7] sm:$0xff]
    %v998 = vld [vmem:[#allocation7 + $0x8] sm:$0xff]
    %v999 = vld [vmem:[#allocation7 + $0x10] sm:$0xff]
    %v1000 = vld [vmem:[#allocation7 + $0x18] sm:$0xff]
    %v1001 = vld [vmem:[#allocation7 + $0x20] sm:$0xff]
    %v1002 = vld [vmem:[#allocation7 + $0x28] sm:$0xff]
    %v1003 = vld [vmem:[#allocation7 + $0x30] sm:$0xff]
    %v1004 = vld [vmem:[#allocation7 + $0x38] sm:$0xff]
    %v1005 = vld [vmem:[#allocation7 + $0x40] sm:$0xff]
    %v1006 = vld [vmem:[#allocation7 + $0x48] sm:$0xff]
    %v1007 = vld [vmem:[#allocation7 + $0x50] sm:$0xff]
    %v1008 = vld [vmem:[#allocation7 + $0x58] sm:$0xff]
    %v1009 = vld [vmem:[#allocation7 + $0x60] sm:$0xff]
    %v1010 = vld [vmem:[#allocation7 + $0x68] sm:$0xff]
    %v1011 = vld [vmem:[#allocation7 + $0x70] sm:$0xff]
    %v1012 = vld [vmem:[#allocation7 + $0x78] sm:$0xff]
    %v1013 = vld [vmem:[#allocation7 + $0x80] sm:$0xff]
    %v1014 = vld [vmem:[#allocation7 + $0x88] sm:$0xff]
    %v1015 = vld [vmem:[#allocation7 + $0x90] sm:$0xff]
    %v1016 = vld [vmem:[#allocation7 + $0x98] sm:$0xff]
    %v1017 = vld [vmem:[#allocation7 + $0xa0] sm:$0xff]
    %v1018 = vld [vmem:[#allocation7 + $0xa8] sm:$0xff]
    %v1019 = vld [vmem:[#allocation7 + $0xb0] sm:$0xff]
    %v1020 = vld [vmem:[#allocation7 + $0xb8] sm:$0xff]
    %v1021 = vld [vmem:[#allocation7 + $0xc0] sm:$0xff]
    %v1022 = vld [vmem:[#allocation7 + $0xc8] sm:$0xff]
    %v1023 = vld [vmem:[#allocation7 + $0xd0] sm:$0xff]
    %v1024 = vld [vmem:[#allocation7 + $0xd8] sm:$0xff]
    %v1025 = vld [vmem:[#allocation7 + $0xe0] sm:$0xff]
    %v1026 = vld [vmem:[#allocation7 + $0xe8] sm:$0xff]
    %v1027 = vld [vmem:[#allocation7 + $0xf0] sm:$0xff]
    %v1028 = vld [vmem:[#allocation7 + $0xf8] sm:$0xff]
    %v1029 = vld [vmem:[#allocation7 + $0x100] sm:$0xff]
    %v1030 = vld [vmem:[#allocation7 + $0x108] sm:$0xff]
    %v1031 = vld [vmem:[#allocation7 + $0x110] sm:$0xff]
    %v1032 = vld [vmem:[#allocation7 + $0x118] sm:$0xff]
    %v1033 = vld [vmem:[#allocation7 + $0x120] sm:$0xff]
    %v1034 = vld [vmem:[#allocation7 + $0x128] sm:$0xff]
    %v1035 = vld [vmem:[#allocation7 + $0x130] sm:$0xff]
    %v1036 = vld [vmem:[#allocation7 + $0x138] sm:$0xff]
    %v1037 = vld [vmem:[#allocation7 + $0x140] sm:$0xff]
    %v1038 = vld [vmem:[#allocation7 + $0x148] sm:$0xff]
    %v1039 = vld [vmem:[#allocation7 + $0x150] sm:$0xff]
    %v1040 = vld [vmem:[#allocation7 + $0x158] sm:$0xff]
    %v1041 = vld [vmem:[#allocation7 + $0x160] sm:$0xff]
    %v1042 = vld [vmem:[#allocation7 + $0x168] sm:$0xff]
    %v1043 = vld [vmem:[#allocation7 + $0x170] sm:$0xff]
    %v1044 = vld [vmem:[#allocation7 + $0x178] sm:$0xff]
    %v1046 = vsel %vm971, %v989, 0
    %v1049 = vsel %vm971, %v990, 0
    %v1052 = vsel %vm971, %v991, 0
    %v1055 = vsel %vm971, %v992, 0
    %v1058 = vsel %vm971, %v993, 0
    %v1061 = vsel %vm971, %v994, 0
    %v1064 = vsel %vm971, %v995, 0
    %v1067 = vsel %vm971, %v996, 0
    %1069 = vmatprep.subr.mxu0 %v998
    %1070 = vmatpush1.msra.mxu0 %v997
    %1071 = vmatprep.subr.mxu0 %v1000
    %1072 = vmatpush1.msra.mxu0 %v999
    %1073 = vmatprep.subr.mxu0 %v1002
    %1074 = vmatpush1.msra.mxu0 %v1001
    %1075 = vmatprep.subr.mxu0 %v1004
    %1076 = vmatpush1.msra.mxu0 %v1003
    %1077 = vmatprep.subr.mxu0 %v1006
    %1078 = vmatpush1.msra.mxu0 %v1005
    %1079 = vmatprep.subr.mxu0 %v1008
    %1080 = vmatpush1.msra.mxu0 %v1007
    %1081 = vmatprep.subr.mxu0 %v1010
    %1082 = vmatpush1.msra.mxu0 %v1009
    %1083 = vmatprep.subr.mxu0 %v1012
    %1084 = vmatpush1.msra.mxu0 %v1011
    %1085 = vmatprep.subr.mxu0 %v1014
    %1086 = vmatpush1.msra.mxu0 %v1013
    %1087 = vmatprep.subr.mxu0 %v1016
    %1088 = vmatpush1.msra.mxu0 %v1015
    %1089 = vmatprep.subr.mxu0 %v1018
    %1090 = vmatpush1.msra.mxu0 %v1017
    %1091 = vmatprep.subr.mxu0 %v1020
    %1092 = vmatpush1.msra.mxu0 %v1019
    %1093 = vmatprep.subr.mxu0 %v1022
    %1094 = vmatpush1.msra.mxu0 %v1021
    %1095 = vmatprep.subr.mxu0 %v1024
    %1096 = vmatpush1.msra.mxu0 %v1023
    %1097 = vmatprep.subr.mxu0 %v1026
    %1098 = vmatpush1.msra.mxu0 %v1025
    %1099 = vmatprep.subr.mxu0 %v1028
    %1100 = vmatpush1.msra.mxu0 %v1027
    %1101 = vmatprep.subr.mxu0 %v1030
    %1102 = vmatpush1.msra.mxu0 %v1029
    %1103 = vmatprep.subr.mxu0 %v1032
    %1104 = vmatpush1.msra.mxu0 %v1031
    %1105 = vmatprep.subr.mxu0 %v1034
    %1106 = vmatpush1.msra.mxu0 %v1033
    %1107 = vmatprep.subr.mxu0 %v1036
    %1108 = vmatpush1.msra.mxu0 %v1035
    %1109 = vmatprep.subr.mxu0 %v1038
    %1110 = vmatpush1.msra.mxu0 %v1037
    %1111 = vmatprep.subr.mxu0 %v1040
    %1112 = vmatpush1.msra.mxu0 %v1039
    %1113 = vmatprep.subr.mxu0 %v1042
    %1114 = vmatpush1.msra.mxu0 %v1041
    %1115 = vmatprep.subr.mxu0 %v1044
    %1116 = vmatpush1.msra.mxu0 %v1043
    %1117 = vmatprep.subr.mxu0 0.0
    %1118 = vmatpush1.msra.mxu0 0.0
    %1119 = vmatprep.subr.mxu0 0.0
    %1120 = vmatpush1.msra.mxu0 0.0
    %1121 = vmatprep.subr.mxu0 0.0
    %1122 = vmatpush1.msra.mxu0 0.0
    %1123 = vmatprep.subr.mxu0 0.0
    %1124 = vmatpush1.msra.mxu0 0.0
    %1125 = vmatprep.subr.mxu0 0.0
    %1126 = vmatpush1.msra.mxu0 0.0
    %1127 = vmatprep.subr.mxu0 0.0
    %1128 = vmatpush1.msra.mxu0 0.0
    %1129 = vmatprep.subr.mxu0 0.0
    %1130 = vmatpush1.msra.mxu0 0.0
    %1131 = vmatprep.subr.mxu0 0.0
    %1132 = vmatpush1.msra.mxu0 0.0
    %1133 = vmatprep.mubr.f32.mxu0 %v1046
    %1134 = vmatmul.mubr.f32.gmra.mrb[0].mxu0 %v981
    %v1135 = vpop.f32.mrb[0].mxu0
    %v1136 = vadd.f32 0.0, %v1135
    %v1137 = vpop.f32.mrb[0].mxu0
    %v1138 = vadd.f32 0.0, %v1137
    %1139 = vmatprep.mubr.f32.mxu0 %v1049
    %1140 = vmatmul.mubr.f32.gmra.mrb[0].mxu0 %v982
    %v1141 = vpop.f32.mrb[0].mxu0
    %v1142 = vadd.f32 0.0, %v1141
    %v1143 = vpop.f32.mrb[0].mxu0
    %v1144 = vadd.f32 0.0, %v1143
    %1145 = vmatprep.mubr.f32.mxu0 %v1052
    %1146 = vmatmul.mubr.f32.gmra.mrb[0].mxu0 %v983
    %v1147 = vpop.f32.mrb[0].mxu0
    %v1148 = vadd.f32 0.0, %v1147
    %v1149 = vpop.f32.mrb[0].mxu0
    %v1150 = vadd.f32 0.0, %v1149
    %1151 = vmatprep.mubr.f32.mxu0 %v1055
    %1152 = vmatmul.mubr.f32.gmra.mrb[0].mxu0 %v984
    %v1153 = vpop.f32.mrb[0].mxu0
    %v1154 = vadd.f32 0.0, %v1153
    %v1155 = vpop.f32.mrb[0].mxu0
    %v1156 = vadd.f32 0.0, %v1155
    %1157 = vmatprep.mubr.f32.mxu0 %v1058
    %1158 = vmatmul.mubr.f32.gmra.mrb[0].mxu0 %v985
    %v1159 = vpop.f32.mrb[0].mxu0
    %v1160 = vadd.f32 0.0, %v1159
    %v1161 = vpop.f32.mrb[0].mxu0
    %v1162 = vadd.f32 0.0, %v1161
    %1163 = vmatprep.mubr.f32.mxu0 %v1061
    %1164 = vmatmul.mubr.f32.gmra.mrb[0].mxu0 %v986
    %v1165 = vpop.f32.mrb[0].mxu0
    %v1166 = vadd.f32 0.0, %v1165
    %v1167 = vpop.f32.mrb[0].mxu0
    %v1168 = vadd.f32 0.0, %v1167
    %1169 = vmatprep.mubr.f32.mxu0 %v1064
    %1170 = vmatmul.mubr.f32.gmra.mrb[0].mxu0 %v987
    %v1171 = vpop.f32.mrb[0].mxu0
    %v1172 = vadd.f32 0.0, %v1171
    %v1173 = vpop.f32.mrb[0].mxu0
    %v1174 = vadd.f32 0.0, %v1173
    %1175 = vmatprep.mubr.f32.mxu0 %v1067
    %1176 = vmatmul.mubr.f32.gmra.mrb[0].mxu0 %v988
    %v1177 = vpop.f32.mrb[0].mxu0
    %v1178 = vadd.f32 0.0, %v1177
    %v1179 = vpop.f32.mrb[0].mxu0
    %v1180 = vadd.f32 0.0, %v1179
    %1181 = vdwg.mxu0
    %v1182 = vadd.f32 %v1136, %v1142
    %v1183 = vadd.f32 %v1182, %v1148
    %v1184 = vadd.f32 %v1183, %v1154
    %v1185 = vadd.f32 %v1184, %v1160
    %v1186 = vadd.f32 %v1185, %v1166
    %v1187 = vadd.f32 %v1186, %v1172
    %v1188 = vadd.f32 %v1187, %v1178
    %v1189 = vrot.slane %v1188, 4
    %v1190 = vadd.f32 %v1188, %v1189
    %v1191 = vrot.slane %v1190, 2
    %v1192 = vadd.f32 %v1190, %v1191
    %v1193 = vrot.slane %v1192, 1
    %v1194 = vadd.f32 %v1192, %v1193
    %v1195 = vadd.f32 %v1138, %v1144
    %v1196 = vadd.f32 %v1195, %v1150
    %v1197 = vadd.f32 %v1196, %v1156
    %v1198 = vadd.f32 %v1197, %v1162
    %v1199 = vadd.f32 %v1198, %v1168
    %v1200 = vadd.f32 %v1199, %v1174
    %v1201 = vadd.f32 %v1200, %v1180
    %v1202 = vrot.slane %v1201, 4
    %v1203 = vadd.f32 %v1201, %v1202
    %v1204 = vrot.slane %v1203, 2
    %v1205 = vadd.f32 %v1203, %v1204
    %v1206 = vrot.slane %v1205, 1
    %v1207 = vadd.f32 %v1205, %v1206
    %v1208 = vmul.f32 %v1136, %v1136
    %v1209 = vmul.f32 %v1138, %v1138
    %v1210 = vmul.f32 %v1142, %v1142
    %v1211 = vmul.f32 %v1144, %v1144
    %v1212 = vmul.f32 %v1148, %v1148
    %v1213 = vmul.f32 %v1150, %v1150
    %v1214 = vmul.f32 %v1154, %v1154
    %v1215 = vmul.f32 %v1156, %v1156
    %v1216 = vmul.f32 %v1160, %v1160
    %v1217 = vmul.f32 %v1162, %v1162
    %v1218 = vmul.f32 %v1166, %v1166
    %v1219 = vmul.f32 %v1168, %v1168
    %v1220 = vmul.f32 %v1172, %v1172
    %v1221 = vmul.f32 %v1174, %v1174
    %v1222 = vmul.f32 %v1178, %v1178
    %v1223 = vmul.f32 %v1180, %v1180
    %v1224 = vadd.f32 %v1208, %v1210
    %v1225 = vadd.f32 %v1224, %v1212
    %v1226 = vadd.f32 %v1225, %v1214
    %v1227 = vadd.f32 %v1226, %v1216
    %v1228 = vadd.f32 %v1227, %v1218
    %v1229 = vadd.f32 %v1228, %v1220
    %v1230 = vadd.f32 %v1229, %v1222
    %v1231 = vrot.slane %v1230, 4
    %v1232 = vadd.f32 %v1230, %v1231
    %v1233 = vrot.slane %v1232, 2
    %v1234 = vadd.f32 %v1232, %v1233
    %v1235 = vrot.slane %v1234, 1
    %v1236 = vadd.f32 %v1234, %v1235
    %v1237 = vadd.f32 %v1209, %v1211
    %v1238 = vadd.f32 %v1237, %v1213
    %v1239 = vadd.f32 %v1238, %v1215
    %v1240 = vadd.f32 %v1239, %v1217
    %v1241 = vadd.f32 %v1240, %v1219
    %v1242 = vadd.f32 %v1241, %v1221
    %v1243 = vadd.f32 %v1242, %v1223
    %v1244 = vrot.slane %v1243, 4
    %v1245 = vadd.f32 %v1243, %v1244
    %v1246 = vrot.slane %v1245, 2
    %v1247 = vadd.f32 %v1245, %v1246
    %v1248 = vrot.slane %v1247, 1
    %v1249 = vadd.f32 %v1247, %v1248
    %1251 = vrot.lane.b32.xlu0 %v1194, 64
    %v1252 = vpop.permute.xlu0 %1251
    %v1254 = vadd.f32 %v1194, %v1252
    %1256 = vrot.lane.b32.xlu0 %v1236, 64
    %v1257 = vpop.permute.xlu0 %1256
    %v1259 = vadd.f32 %v1236, %v1257
    %v1260 = vadd.f32 %v1254, %v1207
    %v1261 = vadd.f32 %v1259, %v1249
    %1263 = vrot.lane.b32.xlu0 %v1207, 64
    %v1264 = vpop.permute.xlu0 %1263
    %v1266 = vadd.f32 %v1260, %v1264
    %1268 = vrot.lane.b32.xlu0 %v1249, 64
    %v1269 = vpop.permute.xlu0 %1268
    %v1271 = vadd.f32 %v1261, %v1269
    %v1272 = vrcp.pop 256.0
    %v1273 = vmul.f32 %v1266, %v1272
    %v1274 = vmul.f32 %v1271, %v1272
    %v1275 = vmul.f32 %v1273, %v1273
    %v1276 = vsub.f32 %v1274, %v1275
    %v1277 = vadd.f32 %v1276, 0.0001
    %v1278 = vrsqrt.pop %v1277
    %1287 = vrot.lane.b32.xlu0 %v1136, 64
    %v1288 = vpop.permute.xlu0 %1287
    %1289 = vrot.lane.b32.xlu0 %v1142, 64
    %v1290 = vpop.permute.xlu0 %1289
    %1291 = vrot.lane.b32.xlu0 %v1148, 64
    %v1292 = vpop.permute.xlu0 %1291
    %1293 = vrot.lane.b32.xlu0 %v1154, 64
    %v1294 = vpop.permute.xlu0 %1293
    %1295 = vrot.lane.b32.xlu0 %v1160, 64
    %v1296 = vpop.permute.xlu0 %1295
    %1297 = vrot.lane.b32.xlu0 %v1166, 64
    %v1298 = vpop.permute.xlu0 %1297
    %1299 = vrot.lane.b32.xlu0 %v1172, 64
    %v1300 = vpop.permute.xlu0 %1299
    %1301 = vrot.lane.b32.xlu0 %v1178, 64
    %v1302 = vpop.permute.xlu0 %1301
    %v1311 = vmax.f32 %v1136, %v1288
    %v1312 = vmax.f32 %v1142, %v1290
    %v1313 = vmax.f32 %v1148, %v1292
    %v1314 = vmax.f32 %v1154, %v1294
    %v1315 = vmax.f32 %v1160, %v1296
    %v1316 = vmax.f32 %v1166, %v1298
    %v1317 = vmax.f32 %v1172, %v1300
    %v1318 = vmax.f32 %v1178, %v1302
    %v1319 = vlaneseq
    %v1320 = vshrl.u32 %v1319, 7
    %v1321 = vsub.s32 0, %v1320
    %v1322 = vrot.slane %v1273, %v1321
    %v1323 = vsub.f32 %v1311, %v1322
    %v1324 = vsub.f32 %v1312, %v1322
    %v1325 = vsub.f32 %v1313, %v1322
    %v1326 = vsub.f32 %v1314, %v1322
    %v1327 = vsub.f32 %v1315, %v1322
    %v1328 = vsub.f32 %v1316, %v1322
    %v1329 = vsub.f32 %v1317, %v1322
    %v1330 = vsub.f32 %v1318, %v1322
    %v1331 = vlaneseq
    %v1332 = vshrl.u32 %v1331, 7
    %v1333 = vsub.s32 0, %v1332
    %v1334 = vrot.slane %v1278, %v1333
    %v1335 = vmul.f32 %v1323, %v1334
    %v1336 = vmul.f32 %v1324, %v1334
    %v1337 = vmul.f32 %v1325, %v1334
    %v1338 = vmul.f32 %v1326, %v1334
    %v1339 = vmul.f32 %v1327, %v1334
    %v1340 = vmul.f32 %v1328, %v1334
    %v1341 = vmul.f32 %v1329, %v1334
    %v1342 = vmul.f32 %v1330, %v1334
    %v1343 = vmul.f32 %v1335, 0.01
    %v1344 = vmul.f32 %v1336, 0.01
    %v1345 = vmul.f32 %v1337, 0.01
    %v1346 = vmul.f32 %v1338, 0.01
    %v1347 = vmul.f32 %v1339, 0.01
    %v1348 = vmul.f32 %v1340, 0.01
    %v1349 = vmul.f32 %v1341, 0.01
    %v1350 = vmul.f32 %v1342, 0.01
    %v1351 = vmax.f32 %v1335, %v1343
    %v1352 = vmax.f32 %v1336, %v1344
    %v1353 = vmax.f32 %v1337, %v1345
    %v1354 = vmax.f32 %v1338, %v1346
    %v1355 = vmax.f32 %v1339, %v1347
    %v1356 = vmax.f32 %v1340, %v1348
    %v1357 = vmax.f32 %v1341, %v1349
    %v1358 = vmax.f32 %v1342, %v1350
    %1367 = vrot.lane.b32.xlu0 %v1138, 64
    %v1368 = vpop.permute.xlu0 %1367
    %1369 = vrot.lane.b32.xlu0 %v1144, 64
    %v1370 = vpop.permute.xlu0 %1369
    %1371 = vrot.lane.b32.xlu0 %v1150, 64
    %v1372 = vpop.permute.xlu0 %1371
    %1373 = vrot.lane.b32.xlu0 %v1156, 64
    %v1374 = vpop.permute.xlu0 %1373
    %1375 = vrot.lane.b32.xlu0 %v1162, 64
    %v1376 = vpop.permute.xlu0 %1375
    %1377 = vrot.lane.b32.xlu0 %v1168, 64
    %v1378 = vpop.permute.xlu0 %1377
    %1379 = vrot.lane.b32.xlu0 %v1174, 64
    %v1380 = vpop.permute.xlu0 %1379
    %1381 = vrot.lane.b32.xlu0 %v1180, 64
    %v1382 = vpop.permute.xlu0 %1381
    %v1391 = vmax.f32 %v1138, %v1368
    %v1392 = vmax.f32 %v1144, %v1370
    %v1393 = vmax.f32 %v1150, %v1372
    %v1394 = vmax.f32 %v1156, %v1374
    %v1395 = vmax.f32 %v1162, %v1376
    %v1396 = vmax.f32 %v1168, %v1378
    %v1397 = vmax.f32 %v1174, %v1380
    %v1398 = vmax.f32 %v1180, %v1382
    %v1399 = vsub.f32 %v1391, %v1322
    %v1400 = vsub.f32 %v1392, %v1322
    %v1401 = vsub.f32 %v1393, %v1322
    %v1402 = vsub.f32 %v1394, %v1322
    %v1403 = vsub.f32 %v1395, %v1322
    %v1404 = vsub.f32 %v1396, %v1322
    %v1405 = vsub.f32 %v1397, %v1322
    %v1406 = vsub.f32 %v1398, %v1322
    %v1407 = vmul.f32 %v1399, %v1334
    %v1408 = vmul.f32 %v1400, %v1334
    %v1409 = vmul.f32 %v1401, %v1334
    %v1410 = vmul.f32 %v1402, %v1334
    %v1411 = vmul.f32 %v1403, %v1334
    %v1412 = vmul.f32 %v1404, %v1334
    %v1413 = vmul.f32 %v1405, %v1334
    %v1414 = vmul.f32 %v1406, %v1334
    %v1415 = vmul.f32 %v1407, 0.01
    %v1416 = vmul.f32 %v1408, 0.01
    %v1417 = vmul.f32 %v1409, 0.01
    %v1418 = vmul.f32 %v1410, 0.01
    %v1419 = vmul.f32 %v1411, 0.01
    %v1420 = vmul.f32 %v1412, 0.01
    %v1421 = vmul.f32 %v1413, 0.01
    %v1422 = vmul.f32 %v1414, 0.01
    %v1423 = vmax.f32 %v1407, %v1415
    %v1424 = vmax.f32 %v1408, %v1416
    %v1425 = vmax.f32 %v1409, %v1417
    %v1426 = vmax.f32 %v1410, %v1418
    %v1427 = vmax.f32 %v1411, %v1419
    %v1428 = vmax.f32 %v1412, %v1420
    %v1429 = vmax.f32 %v1413, %v1421
    %v1430 = vmax.f32 %v1414, %v1422
    %v1431 = vsel %vm762, %v1430, 0.0
    %v1432 = vsel %vm763, %v1423, 0.0
    %v1433 = vsel %vm764, %v1424, 0.0
    %v1434 = vsel %vm765, %v1425, 0.0
    %v1435 = vsel %vm766, %v1426, 0.0
    %v1436 = vsel %vm767, %v1427, 0.0
    %v1437 = vsel %vm768, %v1428, 0.0
    %v1438 = vsel %vm769, %v1429, 0.0
    %v1439 = vsel %vm786, %v1352, 0.0
    %v1440 = vsel %vm787, %v1353, 0.0
    %v1441 = vsel %vm788, %v1354, 0.0
    %v1442 = vsel %vm789, %v1355, 0.0
    %v1443 = vsel %vm790, %v1356, 0.0
    %v1444 = vsel %vm791, %v1357, 0.0
    %v1445 = vsel %vm792, %v1358, 0.0
    %v1446 = vsel %vm793, %v1351, 0.0
    %1455 = vrot.lane.b32.xlu0 %v1351, 64
    %v1456 = vpop.permute.xlu0 %1455
    %1457 = vrot.lane.b32.xlu0 %v1352, 64
    %v1458 = vpop.permute.xlu0 %1457
    %1459 = vrot.lane.b32.xlu0 %v1353, 64
    %v1460 = vpop.permute.xlu0 %1459
    %1461 = vrot.lane.b32.xlu0 %v1354, 64
    %v1462 = vpop.permute.xlu0 %1461
    %1463 = vrot.lane.b32.xlu0 %v1355, 64
    %v1464 = vpop.permute.xlu0 %1463
    %1465 = vrot.lane.b32.xlu0 %v1356, 64
    %v1466 = vpop.permute.xlu0 %1465
    %1467 = vrot.lane.b32.xlu0 %v1357, 64
    %v1468 = vpop.permute.xlu0 %1467
    %1469 = vrot.lane.b32.xlu0 %v1358, 64
    %v1470 = vpop.permute.xlu0 %1469
    %1487 = vrot.lane.b32.xlu0 %v1439, 64
    %v1488 = vpop.permute.xlu0 %1487
    %1489 = vrot.lane.b32.xlu0 %v1440, 64
    %v1490 = vpop.permute.xlu0 %1489
    %1491 = vrot.lane.b32.xlu0 %v1441, 64
    %v1492 = vpop.permute.xlu0 %1491
    %1493 = vrot.lane.b32.xlu0 %v1442, 64
    %v1494 = vpop.permute.xlu0 %1493
    %1495 = vrot.lane.b32.xlu0 %v1443, 64
    %v1496 = vpop.permute.xlu0 %1495
    %1497 = vrot.lane.b32.xlu0 %v1444, 64
    %v1498 = vpop.permute.xlu0 %1497
    %1499 = vrot.lane.b32.xlu0 %v1445, 64
    %v1500 = vpop.permute.xlu0 %1499
    %1501 = vrot.lane.b32.xlu0 %v1446, 64
    %v1502 = vpop.permute.xlu0 %1501
    %v1511 = vsel %vm971, %v1431, %v1456
    %v1512 = vsel %vm971, %v1432, %v1458
    %v1513 = vsel %vm971, %v1433, %v1460
    %v1514 = vsel %vm971, %v1434, %v1462
    %v1515 = vsel %vm971, %v1435, %v1464
    %v1516 = vsel %vm971, %v1436, %v1466
    %v1517 = vsel %vm971, %v1437, %v1468
    %v1518 = vsel %vm971, %v1438, %v1470
    %v1519 = vsel %vm971, %v1423, %v1488
    %v1520 = vsel %vm971, %v1424, %v1490
    %v1521 = vsel %vm971, %v1425, %v1492
    %v1522 = vsel %vm971, %v1426, %v1494
    %v1523 = vsel %vm971, %v1427, %v1496
    %v1524 = vsel %vm971, %v1428, %v1498
    %v1525 = vsel %vm971, %v1429, %v1500
    %v1526 = vsel %vm971, %v1430, %v1502
    %v1527 = vld [vmem:[#allocation8] sm:$0xff]
    %v1528 = vld [vmem:[#allocation8 + $0x8] sm:$0xff]
    %v1529 = vld [vmem:[#allocation8 + $0x10] sm:$0xff]
    %v1530 = vld [vmem:[#allocation8 + $0x18] sm:$0xff]
    %v1531 = vld [vmem:[#allocation8 + $0x20] sm:$0xff]
    %v1532 = vld [vmem:[#allocation8 + $0x28] sm:$0xff]
    %v1533 = vld [vmem:[#allocation8 + $0x30] sm:$0xff]
    %v1534 = vld [vmem:[#allocation8 + $0x38] sm:$0xff]
    %v1535 = vld [vmem:[#allocation8 + $0x40] sm:$0xff]
    %v1536 = vld [vmem:[#allocation8 + $0x48] sm:$0xff]
    %v1537 = vld [vmem:[#allocation8 + $0x50] sm:$0xff]
    %v1538 = vld [vmem:[#allocation8 + $0x58] sm:$0xff]
    %v1539 = vld [vmem:[#allocation8 + $0x60] sm:$0xff]
    %v1540 = vld [vmem:[#allocation8 + $0x68] sm:$0xff]
    %v1541 = vld [vmem:[#allocation8 + $0x70] sm:$0xff]
    %v1542 = vld [vmem:[#allocation8 + $0x78] sm:$0xff]
    %v1543 = vld [vmem:[#allocation8 + $0x80] sm:$0xff]
    %v1544 = vld [vmem:[#allocation8 + $0x88] sm:$0xff]
    %v1545 = vld [vmem:[#allocation8 + $0x90] sm:$0xff]
    %v1546 = vld [vmem:[#allocation8 + $0x98] sm:$0xff]
    %v1547 = vld [vmem:[#allocation8 + $0xa0] sm:$0xff]
    %v1548 = vld [vmem:[#allocation8 + $0xa8] sm:$0xff]
    %v1549 = vld [vmem:[#allocation8 + $0xb0] sm:$0xff]
    %v1550 = vld [vmem:[#allocation8 + $0xb8] sm:$0xff]
    %v1551 = vld [vmem:[#allocation8 + $0xc0] sm:$0xff]
    %v1552 = vld [vmem:[#allocation8 + $0xc8] sm:$0xff]
    %v1553 = vld [vmem:[#allocation8 + $0xd0] sm:$0xff]
    %v1554 = vld [vmem:[#allocation8 + $0xd8] sm:$0xff]
    %v1555 = vld [vmem:[#allocation8 + $0xe0] sm:$0xff]
    %v1556 = vld [vmem:[#allocation8 + $0xe8] sm:$0xff]
    %v1557 = vld [vmem:[#allocation8 + $0xf0] sm:$0xff]
    %v1558 = vld [vmem:[#allocation8 + $0xf8] sm:$0xff]
    %v1559 = vld [vmem:[#allocation8 + $0x100] sm:$0xff]
    %v1560 = vld [vmem:[#allocation8 + $0x108] sm:$0xff]
    %v1561 = vld [vmem:[#allocation8 + $0x110] sm:$0xff]
    %v1562 = vld [vmem:[#allocation8 + $0x118] sm:$0xff]
    %v1563 = vld [vmem:[#allocation8 + $0x120] sm:$0xff]
    %v1564 = vld [vmem:[#allocation8 + $0x128] sm:$0xff]
    %v1565 = vld [vmem:[#allocation8 + $0x130] sm:$0xff]
    %v1566 = vld [vmem:[#allocation8 + $0x138] sm:$0xff]
    %v1567 = vld [vmem:[#allocation8 + $0x140] sm:$0xff]
    %v1568 = vld [vmem:[#allocation8 + $0x148] sm:$0xff]
    %v1569 = vld [vmem:[#allocation8 + $0x150] sm:$0xff]
    %v1570 = vld [vmem:[#allocation8 + $0x158] sm:$0xff]
    %v1571 = vld [vmem:[#allocation8 + $0x160] sm:$0xff]
    %v1572 = vld [vmem:[#allocation8 + $0x168] sm:$0xff]
    %v1573 = vld [vmem:[#allocation8 + $0x170] sm:$0xff]
    %v1574 = vld [vmem:[#allocation8 + $0x178] sm:$0xff]
    %v1575 = vld [vmem:[#allocation8 + $0x180] sm:$0xff]
    %v1576 = vld [vmem:[#allocation8 + $0x188] sm:$0xff]
    %v1577 = vld [vmem:[#allocation8 + $0x190] sm:$0xff]
    %v1578 = vld [vmem:[#allocation8 + $0x198] sm:$0xff]
    %v1579 = vld [vmem:[#allocation8 + $0x1a0] sm:$0xff]
    %v1580 = vld [vmem:[#allocation8 + $0x1a8] sm:$0xff]
    %v1581 = vld [vmem:[#allocation8 + $0x1b0] sm:$0xff]
    %v1582 = vld [vmem:[#allocation8 + $0x1b8] sm:$0xff]
    %v1583 = vld [vmem:[#allocation8 + $0x1c0] sm:$0xff]
    %v1584 = vld [vmem:[#allocation8 + $0x1c8] sm:$0xff]
    %v1585 = vld [vmem:[#allocation8 + $0x1d0] sm:$0xff]
    %v1586 = vld [vmem:[#allocation8 + $0x1d8] sm:$0xff]
    %v1587 = vld [vmem:[#allocation8 + $0x1e0] sm:$0xff]
    %v1588 = vld [vmem:[#allocation8 + $0x1e8] sm:$0xff]
    %v1589 = vld [vmem:[#allocation8 + $0x1f0] sm:$0xff]
    %v1590 = vld [vmem:[#allocation8 + $0x1f8] sm:$0xff]
    %1591 = vmatprep.subr.mxu0 %v1528
    %1592 = vmatpush1.msra.mxu0 %v1527
    %1593 = vmatprep.subr.mxu0 %v1530
    %1594 = vmatpush1.msra.mxu0 %v1529
    %1595 = vmatprep.subr.mxu0 %v1532
    %1596 = vmatpush1.msra.mxu0 %v1531
    %1597 = vmatprep.subr.mxu0 %v1534
    %1598 = vmatpush1.msra.mxu0 %v1533
    %1599 = vmatprep.subr.mxu0 %v1536
    %1600 = vmatpush1.msra.mxu0 %v1535
    %1601 = vmatprep.subr.mxu0 %v1538
    %1602 = vmatpush1.msra.mxu0 %v1537
    %1603 = vmatprep.subr.mxu0 %v1540
    %1604 = vmatpush1.msra.mxu0 %v1539
    %1605 = vmatprep.subr.mxu0 %v1542
    %1606 = vmatpush1.msra.mxu0 %v1541
    %1607 = vmatprep.subr.mxu0 %v1544
    %1608 = vmatpush1.msra.mxu0 %v1543
    %1609 = vmatprep.subr.mxu0 %v1546
    %1610 = vmatpush1.msra.mxu0 %v1545
    %1611 = vmatprep.subr.mxu0 %v1548
    %1612 = vmatpush1.msra.mxu0 %v1547
    %1613 = vmatprep.subr.mxu0 %v1550
    %1614 = vmatpush1.msra.mxu0 %v1549
    %1615 = vmatprep.subr.mxu0 %v1552
    %1616 = vmatpush1.msra.mxu0 %v1551
    %1617 = vmatprep.subr.mxu0 %v1554
    %1618 = vmatpush1.msra.mxu0 %v1553
    %1619 = vmatprep.subr.mxu0 %v1556
    %1620 = vmatpush1.msra.mxu0 %v1555
    %1621 = vmatprep.subr.mxu0 %v1558
    %1622 = vmatpush1.msra.mxu0 %v1557
    %1623 = vmatprep.subr.mxu0 %v1560
    %1624 = vmatpush1.msra.mxu0 %v1559
    %1625 = vmatprep.subr.mxu0 %v1562
    %1626 = vmatpush1.msra.mxu0 %v1561
    %1627 = vmatprep.subr.mxu0 %v1564
    %1628 = vmatpush1.msra.mxu0 %v1563
    %1629 = vmatprep.subr.mxu0 %v1566
    %1630 = vmatpush1.msra.mxu0 %v1565
    %1631 = vmatprep.subr.mxu0 %v1568
    %1632 = vmatpush1.msra.mxu0 %v1567
    %1633 = vmatprep.subr.mxu0 %v1570
    %1634 = vmatpush1.msra.mxu0 %v1569
    %1635 = vmatprep.subr.mxu0 %v1572
    %1636 = vmatpush1.msra.mxu0 %v1571
    %1637 = vmatprep.subr.mxu0 %v1574
    %1638 = vmatpush1.msra.mxu0 %v1573
    %1639 = vmatprep.subr.mxu0 %v1576
    %1640 = vmatpush1.msra.mxu0 %v1575
    %1641 = vmatprep.subr.mxu0 %v1578
    %1642 = vmatpush1.msra.mxu0 %v1577
    %1643 = vmatprep.subr.mxu0 %v1580
    %1644 = vmatpush1.msra.mxu0 %v1579
    %1645 = vmatprep.subr.mxu0 %v1582
    %1646 = vmatpush1.msra.mxu0 %v1581
    %1647 = vmatprep.subr.mxu0 %v1584
    %1648 = vmatpush1.msra.mxu0 %v1583
    %1649 = vmatprep.subr.mxu0 %v1586
    %1650 = vmatpush1.msra.mxu0 %v1585
    %1651 = vmatprep.subr.mxu0 %v1588
    %1652 = vmatpush1.msra.mxu0 %v1587
    %1653 = vmatprep.subr.mxu0 %v1590
    %1654 = vmatpush1.msra.mxu0 %v1589
    %1655 = vmatprep.mubr.f32.mxu0 %v1519
    %1656 = vmatmul.mubr.f32.gmra.mrb[0].mxu0 %v1511
    %v1657 = vpop.f32.mrb[0].mxu0
    %v1658 = vadd.f32 0.0, %v1657
    %v1659 = vpop.f32.mrb[0].mxu0
    %v1660 = vadd.f32 0.0, %v1659
    %1661 = vmatprep.mubr.f32.mxu0 %v1520
    %1662 = vmatmul.mubr.f32.gmra.mrb[0].mxu0 %v1512
    %v1663 = vpop.f32.mrb[0].mxu0
    %v1664 = vadd.f32 0.0, %v1663
    %v1665 = vpop.f32.mrb[0].mxu0
    %v1666 = vadd.f32 0.0, %v1665
    %1667 = vmatprep.mubr.f32.mxu0 %v1521
    %1668 = vmatmul.mubr.f32.gmra.mrb[0].mxu0 %v1513
    %v1669 = vpop.f32.mrb[0].mxu0
    %v1670 = vadd.f32 0.0, %v1669
    %v1671 = vpop.f32.mrb[0].mxu0
    %v1672 = vadd.f32 0.0, %v1671
    %1673 = vmatprep.mubr.f32.mxu0 %v1522
    %1674 = vmatmul.mubr.f32.gmra.mrb[0].mxu0 %v1514
    %v1675 = vpop.f32.mrb[0].mxu0
    %v1676 = vadd.f32 0.0, %v1675
    %v1677 = vpop.f32.mrb[0].mxu0
    %v1678 = vadd.f32 0.0, %v1677
    %1679 = vmatprep.mubr.f32.mxu0 %v1523
    %1680 = vmatmul.mubr.f32.gmra.mrb[0].mxu0 %v1515
    %v1681 = vpop.f32.mrb[0].mxu0
    %v1682 = vadd.f32 0.0, %v1681
    %v1683 = vpop.f32.mrb[0].mxu0
    %v1684 = vadd.f32 0.0, %v1683
    %1685 = vmatprep.mubr.f32.mxu0 %v1524
    %1686 = vmatmul.mubr.f32.gmra.mrb[0].mxu0 %v1516
    %v1687 = vpop.f32.mrb[0].mxu0
    %v1688 = vadd.f32 0.0, %v1687
    %v1689 = vpop.f32.mrb[0].mxu0
    %v1690 = vadd.f32 0.0, %v1689
    %1691 = vmatprep.mubr.f32.mxu0 %v1525
    %1692 = vmatmul.mubr.f32.gmra.mrb[0].mxu0 %v1517
    %v1693 = vpop.f32.mrb[0].mxu0
    %v1694 = vadd.f32 0.0, %v1693
    %v1695 = vpop.f32.mrb[0].mxu0
    %v1696 = vadd.f32 0.0, %v1695
    %1697 = vmatprep.mubr.f32.mxu0 %v1526
    %1698 = vmatmul.mubr.f32.gmra.mrb[0].mxu0 %v1518
    %v1699 = vpop.f32.mrb[0].mxu0
    %v1700 = vadd.f32 0.0, %v1699
    %v1701 = vpop.f32.mrb[0].mxu0
    %v1702 = vadd.f32 0.0, %v1701
    %1703 = vdwg.mxu0
    %v1704 = vadd.f32 %v1658, %v1664
    %v1705 = vadd.f32 %v1704, %v1670
    %v1706 = vadd.f32 %v1705, %v1676
    %v1707 = vadd.f32 %v1706, %v1682
    %v1708 = vadd.f32 %v1707, %v1688
    %v1709 = vadd.f32 %v1708, %v1694
    %v1710 = vadd.f32 %v1709, %v1700
    %v1711 = vrot.slane %v1710, 4
    %v1712 = vadd.f32 %v1710, %v1711
    %v1713 = vrot.slane %v1712, 2
    %v1714 = vadd.f32 %v1712, %v1713
    %v1715 = vrot.slane %v1714, 1
    %v1716 = vadd.f32 %v1714, %v1715
    %v1717 = vadd.f32 %v1660, %v1666
    %v1718 = vadd.f32 %v1717, %v1672
    %v1719 = vadd.f32 %v1718, %v1678
    %v1720 = vadd.f32 %v1719, %v1684
    %v1721 = vadd.f32 %v1720, %v1690
    %v1722 = vadd.f32 %v1721, %v1696
    %v1723 = vadd.f32 %v1722, %v1702
    %v1724 = vrot.slane %v1723, 4
    %v1725 = vadd.f32 %v1723, %v1724
    %v1726 = vrot.slane %v1725, 2
    %v1727 = vadd.f32 %v1725, %v1726
    %v1728 = vrot.slane %v1727, 1
    %v1729 = vadd.f32 %v1727, %v1728
    %v1730 = vmul.f32 %v1658, %v1658
    %v1731 = vmul.f32 %v1660, %v1660
    %v1732 = vmul.f32 %v1664, %v1664
    %v1733 = vmul.f32 %v1666, %v1666
    %v1734 = vmul.f32 %v1670, %v1670
    %v1735 = vmul.f32 %v1672, %v1672
    %v1736 = vmul.f32 %v1676, %v1676
    %v1737 = vmul.f32 %v1678, %v1678
    %v1738 = vmul.f32 %v1682, %v1682
    %v1739 = vmul.f32 %v1684, %v1684
    %v1740 = vmul.f32 %v1688, %v1688
    %v1741 = vmul.f32 %v1690, %v1690
    %v1742 = vmul.f32 %v1694, %v1694
    %v1743 = vmul.f32 %v1696, %v1696
    %v1744 = vmul.f32 %v1700, %v1700
    %v1745 = vmul.f32 %v1702, %v1702
    %v1746 = vadd.f32 %v1730, %v1732
    %v1747 = vadd.f32 %v1746, %v1734
    %v1748 = vadd.f32 %v1747, %v1736
    %v1749 = vadd.f32 %v1748, %v1738
    %v1750 = vadd.f32 %v1749, %v1740
    %v1751 = vadd.f32 %v1750, %v1742
    %v1752 = vadd.f32 %v1751, %v1744
    %v1753 = vrot.slane %v1752, 4
    %v1754 = vadd.f32 %v1752, %v1753
    %v1755 = vrot.slane %v1754, 2
    %v1756 = vadd.f32 %v1754, %v1755
    %v1757 = vrot.slane %v1756, 1
    %v1758 = vadd.f32 %v1756, %v1757
    %v1759 = vadd.f32 %v1731, %v1733
    %v1760 = vadd.f32 %v1759, %v1735
    %v1761 = vadd.f32 %v1760, %v1737
    %v1762 = vadd.f32 %v1761, %v1739
    %v1763 = vadd.f32 %v1762, %v1741
    %v1764 = vadd.f32 %v1763, %v1743
    %v1765 = vadd.f32 %v1764, %v1745
    %v1766 = vrot.slane %v1765, 4
    %v1767 = vadd.f32 %v1765, %v1766
    %v1768 = vrot.slane %v1767, 2
    %v1769 = vadd.f32 %v1767, %v1768
    %v1770 = vrot.slane %v1769, 1
    %v1771 = vadd.f32 %v1769, %v1770
    %v1772 = vadd.f32 %v1716, %v1729
    %v1773 = vadd.f32 %v1758, %v1771
    %v1774 = vrcp.pop 128.0
    %v1775 = vmul.f32 %v1772, %v1774
    %v1776 = vmul.f32 %v1773, %v1774
    %v1777 = vmul.f32 %v1775, %v1775
    %v1778 = vsub.f32 %v1776, %v1777
    %v1779 = vadd.f32 %v1778, 0.0001
    %v1780 = vrsqrt.pop %v1779
    %v1781 = vmax.f32 %v1658, %v1660
    %v1782 = vmax.f32 %v1664, %v1666
    %v1783 = vmax.f32 %v1670, %v1672
    %v1784 = vmax.f32 %v1676, %v1678
    %v1785 = vmax.f32 %v1682, %v1684
    %v1786 = vmax.f32 %v1688, %v1690
    %v1787 = vmax.f32 %v1694, %v1696
    %v1788 = vmax.f32 %v1700, %v1702
    %v1789 = vsub.f32 %v1781, %v1775
    %v1790 = vsub.f32 %v1782, %v1775
    %v1791 = vsub.f32 %v1783, %v1775
    %v1792 = vsub.f32 %v1784, %v1775
    %v1793 = vsub.f32 %v1785, %v1775
    %v1794 = vsub.f32 %v1786, %v1775
    %v1795 = vsub.f32 %v1787, %v1775
    %v1796 = vsub.f32 %v1788, %v1775
    %v1797 = vmul.f32 %v1789, %v1780
    %v1798 = vmul.f32 %v1790, %v1780
    %v1799 = vmul.f32 %v1791, %v1780
    %v1800 = vmul.f32 %v1792, %v1780
    %v1801 = vmul.f32 %v1793, %v1780
    %v1802 = vmul.f32 %v1794, %v1780
    %v1803 = vmul.f32 %v1795, %v1780
    %v1804 = vmul.f32 %v1796, %v1780
    %v1805 = vmul.f32 %v1797, 0.01
    %v1806 = vmul.f32 %v1798, 0.01
    %v1807 = vmul.f32 %v1799, 0.01
    %v1808 = vmul.f32 %v1800, 0.01
    %v1809 = vmul.f32 %v1801, 0.01
    %v1810 = vmul.f32 %v1802, 0.01
    %v1811 = vmul.f32 %v1803, 0.01
    %v1812 = vmul.f32 %v1804, 0.01
    %v1813 = vmax.f32 %v1797, %v1805
    %v1814 = vmax.f32 %v1798, %v1806
    %v1815 = vmax.f32 %v1799, %v1807
    %v1816 = vmax.f32 %v1800, %v1808
    %v1817 = vmax.f32 %v1801, %v1809
    %v1818 = vmax.f32 %v1802, %v1810
    %v1819 = vmax.f32 %v1803, %v1811
    %v1820 = vmax.f32 %v1804, %v1812
    %v1821 = vld [vmem:[#allocation10] sm:$0xff]
    %v1822 = vld [vmem:[#allocation10 + $0x8] sm:$0xff]
    %v1823 = vld [vmem:[#allocation10 + $0x10] sm:$0xff]
    %v1824 = vld [vmem:[#allocation10 + $0x18] sm:$0xff]
    %v1825 = vld [vmem:[#allocation10 + $0x20] sm:$0xff]
    %v1826 = vld [vmem:[#allocation10 + $0x28] sm:$0xff]
    %v1827 = vld [vmem:[#allocation10 + $0x30] sm:$0xff]
    %v1828 = vld [vmem:[#allocation10 + $0x38] sm:$0xff]
    %v1829 = vld [vmem:[#allocation10 + $0x40] sm:$0xff]
    %v1830 = vld [vmem:[#allocation10 + $0x48] sm:$0xff]
    %v1831 = vld [vmem:[#allocation10 + $0x50] sm:$0xff]
    %v1832 = vld [vmem:[#allocation10 + $0x58] sm:$0xff]
    %v1833 = vld [vmem:[#allocation10 + $0x60] sm:$0xff]
    %v1834 = vld [vmem:[#allocation10 + $0x68] sm:$0xff]
    %v1835 = vld [vmem:[#allocation10 + $0x70] sm:$0xff]
    %v1836 = vld [vmem:[#allocation10 + $0x78] sm:$0xff]
    %s1837 = scalar_lea.vmem [#allocation10], 128
    %v1838 = vld [vmem:[%s1837] sm:$0xff]
    %v1839 = vld [vmem:[%s1837 + $0x8] sm:$0xff]
    %v1840 = vld [vmem:[%s1837 + $0x10] sm:$0xff]
    %v1841 = vld [vmem:[%s1837 + $0x18] sm:$0xff]
    %v1842 = vld [vmem:[%s1837 + $0x20] sm:$0xff]
    %v1843 = vld [vmem:[%s1837 + $0x28] sm:$0xff]
    %v1844 = vld [vmem:[%s1837 + $0x30] sm:$0xff]
    %v1845 = vld [vmem:[%s1837 + $0x38] sm:$0xff]
    %v1846 = vld [vmem:[%s1837 + $0x40] sm:$0xff]
    %v1847 = vld [vmem:[%s1837 + $0x48] sm:$0xff]
    %v1848 = vld [vmem:[%s1837 + $0x50] sm:$0xff]
    %v1849 = vld [vmem:[%s1837 + $0x58] sm:$0xff]
    %v1850 = vld [vmem:[%s1837 + $0x60] sm:$0xff]
    %v1851 = vld [vmem:[%s1837 + $0x68] sm:$0xff]
    %v1852 = vld [vmem:[%s1837 + $0x70] sm:$0xff]
    %v1853 = vld [vmem:[%s1837 + $0x78] sm:$0xff]
    %1854 = vmatprep.subr.mxu0 0.0
    %1855 = vmatpush1.msra.mxu0 %v1838
    %1856 = vmatprep.subr.mxu0 0.0
    %1857 = vmatpush1.msra.mxu0 %v1839
    %1858 = vmatprep.subr.mxu0 0.0
    %1859 = vmatpush1.msra.mxu0 %v1840
    %1860 = vmatprep.subr.mxu0 0.0
    %1861 = vmatpush1.msra.mxu0 %v1841
    %1862 = vmatprep.subr.mxu0 0.0
    %1863 = vmatpush1.msra.mxu0 %v1842
    %1864 = vmatprep.subr.mxu0 0.0
    %1865 = vmatpush1.msra.mxu0 %v1843
    %1866 = vmatprep.subr.mxu0 0.0
    %1867 = vmatpush1.msra.mxu0 %v1844
    %1868 = vmatprep.subr.mxu0 0.0
    %1869 = vmatpush1.msra.mxu0 %v1845
    %1870 = vmatprep.subr.mxu0 0.0
    %1871 = vmatpush1.msra.mxu0 %v1846
    %1872 = vmatprep.subr.mxu0 0.0
    %1873 = vmatpush1.msra.mxu0 %v1847
    %1874 = vmatprep.subr.mxu0 0.0
    %1875 = vmatpush1.msra.mxu0 %v1848
    %1876 = vmatprep.subr.mxu0 0.0
    %1877 = vmatpush1.msra.mxu0 %v1849
    %1878 = vmatprep.subr.mxu0 0.0
    %1879 = vmatpush1.msra.mxu0 %v1850
    %1880 = vmatprep.subr.mxu0 0.0
    %1881 = vmatpush1.msra.mxu0 %v1851
    %1882 = vmatprep.subr.mxu0 0.0
    %1883 = vmatpush1.msra.mxu0 %v1852
    %1884 = vmatprep.subr.mxu0 0.0
    %1885 = vmatpush1.msra.mxu0 %v1853
    %1886 = vmatprep.subr.mxu0 0.0
    %1887 = vmatpush1.msra.mxu0 0.0
    %1888 = vmatprep.subr.mxu0 0.0
    %1889 = vmatpush1.msra.mxu0 0.0
    %1890 = vmatprep.subr.mxu0 0.0
    %1891 = vmatpush1.msra.mxu0 0.0
    %1892 = vmatprep.subr.mxu0 0.0
    %1893 = vmatpush1.msra.mxu0 0.0
    %1894 = vmatprep.subr.mxu0 0.0
    %1895 = vmatpush1.msra.mxu0 0.0
    %1896 = vmatprep.subr.mxu0 0.0
    %1897 = vmatpush1.msra.mxu0 0.0
    %1898 = vmatprep.subr.mxu0 0.0
    %1899 = vmatpush1.msra.mxu0 0.0
    %1900 = vmatprep.subr.mxu0 0.0
    %1901 = vmatpush1.msra.mxu0 0.0
    %1902 = vmatprep.subr.mxu0 0.0
    %1903 = vmatpush1.msra.mxu0 0.0
    %1904 = vmatprep.subr.mxu0 0.0
    %1905 = vmatpush1.msra.mxu0 0.0
    %1906 = vmatprep.subr.mxu0 0.0
    %1907 = vmatpush1.msra.mxu0 0.0
    %1908 = vmatprep.subr.mxu0 0.0
    %1909 = vmatpush1.msra.mxu0 0.0
    %1910 = vmatprep.subr.mxu0 0.0
    %1911 = vmatpush1.msra.mxu0 0.0
    %1912 = vmatprep.subr.mxu0 0.0
    %1913 = vmatpush1.msra.mxu0 0.0
    %1914 = vmatprep.subr.mxu0 0.0
    %1915 = vmatpush1.msra.mxu0 0.0
    %1916 = vmatprep.subr.mxu0 0.0
    %1917 = vmatpush1.msra.mxu0 0.0
    %1918 = vmatprep.mubr.f32.mxu0 0.0
    %1919 = vmatmul.mubr.f32.gmra.mrb[0].mxu0 %v1814
    %v1920 = vpop.f32.mrb[0].mxu0
    %v1921 = vadd.f32 0.0, %v1920
    %v1922 = vpop.f32.mrb[0].mxu0
    %1923 = vdwg.mxu0
    %1924 = vmatprep.subr.mxu0 0.0
    %1925 = vmatpush1.msra.mxu0 %v1821
    %1926 = vmatprep.subr.mxu0 0.0
    %1927 = vmatpush1.msra.mxu0 %v1822
    %1928 = vmatprep.subr.mxu0 0.0
    %1929 = vmatpush1.msra.mxu0 %v1823
    %1930 = vmatprep.subr.mxu0 0.0
    %1931 = vmatpush1.msra.mxu0 %v1824
    %1932 = vmatprep.subr.mxu0 0.0
    %1933 = vmatpush1.msra.mxu0 %v1825
    %1934 = vmatprep.subr.mxu0 0.0
    %1935 = vmatpush1.msra.mxu0 %v1826
    %1936 = vmatprep.subr.mxu0 0.0
    %1937 = vmatpush1.msra.mxu0 %v1827
    %1938 = vmatprep.subr.mxu0 0.0
    %1939 = vmatpush1.msra.mxu0 %v1828
    %1940 = vmatprep.subr.mxu0 0.0
    %1941 = vmatpush1.msra.mxu0 %v1829
    %1942 = vmatprep.subr.mxu0 0.0
    %1943 = vmatpush1.msra.mxu0 %v1830
    %1944 = vmatprep.subr.mxu0 0.0
    %1945 = vmatpush1.msra.mxu0 %v1831
    %1946 = vmatprep.subr.mxu0 0.0
    %1947 = vmatpush1.msra.mxu0 %v1832
    %1948 = vmatprep.subr.mxu0 0.0
    %1949 = vmatpush1.msra.mxu0 %v1833
    %1950 = vmatprep.subr.mxu0 0.0
    %1951 = vmatpush1.msra.mxu0 %v1834
    %1952 = vmatprep.subr.mxu0 0.0
    %1953 = vmatpush1.msra.mxu0 %v1835
    %1954 = vmatprep.subr.mxu0 0.0
    %1955 = vmatpush1.msra.mxu0 %v1836
    %1956 = vmatprep.subr.mxu0 0.0
    %1957 = vmatpush1.msra.mxu0 0.0
    %1958 = vmatprep.subr.mxu0 0.0
    %1959 = vmatpush1.msra.mxu0 0.0
    %1960 = vmatprep.subr.mxu0 0.0
    %1961 = vmatpush1.msra.mxu0 0.0
    %1962 = vmatprep.subr.mxu0 0.0
    %1963 = vmatpush1.msra.mxu0 0.0
    %1964 = vmatprep.subr.mxu0 0.0
    %1965 = vmatpush1.msra.mxu0 0.0
    %1966 = vmatprep.subr.mxu0 0.0
    %1967 = vmatpush1.msra.mxu0 0.0
    %1968 = vmatprep.subr.mxu0 0.0
    %1969 = vmatpush1.msra.mxu0 0.0
    %1970 = vmatprep.subr.mxu0 0.0
    %1971 = vmatpush1.msra.mxu0 0.0
    %1972 = vmatprep.subr.mxu0 0.0
    %1973 = vmatpush1.msra.mxu0 0.0
    %1974 = vmatprep.subr.mxu0 0.0
    %1975 = vmatpush1.msra.mxu0 0.0
    %1976 = vmatprep.subr.mxu0 0.0
    %1977 = vmatpush1.msra.mxu0 0.0
    %1978 = vmatprep.subr.mxu0 0.0
    %1979 = vmatpush1.msra.mxu0 0.0
    %1980 = vmatprep.subr.mxu0 0.0
    %1981 = vmatpush1.msra.mxu0 0.0
    %1982 = vmatprep.subr.mxu0 0.0
    %1983 = vmatpush1.msra.mxu0 0.0
    %1984 = vmatprep.subr.mxu0 0.0
    %1985 = vmatpush1.msra.mxu0 0.0
    %1986 = vmatprep.subr.mxu0 0.0
    %1987 = vmatpush1.msra.mxu0 0.0
    %1988 = vmatprep.mubr.f32.mxu0 0.0
    %1989 = vmatmul.mubr.f32.gmra.mrb[0].mxu0 %v1813
    %v1990 = vpop.f32.mrb[0].mxu0
    %v1991 = vadd.f32 %v1921, %v1990
    %v1992 = vpop.f32.mrb[0].mxu0
    %1993 = vdwg.mxu0
    %s1994 = scalar_lea.vmem [#allocation10], 256
    %v1995 = vld [vmem:[%s1994] sm:$0xff]
    %v1996 = vld [vmem:[%s1994 + $0x8] sm:$0xff]
    %v1997 = vld [vmem:[%s1994 + $0x10] sm:$0xff]
    %v1998 = vld [vmem:[%s1994 + $0x18] sm:$0xff]
    %v1999 = vld [vmem:[%s1994 + $0x20] sm:$0xff]
    %v2000 = vld [vmem:[%s1994 + $0x28] sm:$0xff]
    %v2001 = vld [vmem:[%s1994 + $0x30] sm:$0xff]
    %v2002 = vld [vmem:[%s1994 + $0x38] sm:$0xff]
    %v2003 = vld [vmem:[%s1994 + $0x40] sm:$0xff]
    %v2004 = vld [vmem:[%s1994 + $0x48] sm:$0xff]
    %v2005 = vld [vmem:[%s1994 + $0x50] sm:$0xff]
    %v2006 = vld [vmem:[%s1994 + $0x58] sm:$0xff]
    %v2007 = vld [vmem:[%s1994 + $0x60] sm:$0xff]
    %v2008 = vld [vmem:[%s1994 + $0x68] sm:$0xff]
    %v2009 = vld [vmem:[%s1994 + $0x70] sm:$0xff]
    %v2010 = vld [vmem:[%s1994 + $0x78] sm:$0xff]
    %2011 = vmatprep.subr.mxu0 0.0
    %2012 = vmatpush1.msra.mxu0 %v1995
    %2013 = vmatprep.subr.mxu0 0.0
    %2014 = vmatpush1.msra.mxu0 %v1996
    %2015 = vmatprep.subr.mxu0 0.0
    %2016 = vmatpush1.msra.mxu0 %v1997
    %2017 = vmatprep.subr.mxu0 0.0
    %2018 = vmatpush1.msra.mxu0 %v1998
    %2019 = vmatprep.subr.mxu0 0.0
    %2020 = vmatpush1.msra.mxu0 %v1999
    %2021 = vmatprep.subr.mxu0 0.0
    %2022 = vmatpush1.msra.mxu0 %v2000
    %2023 = vmatprep.subr.mxu0 0.0
    %2024 = vmatpush1.msra.mxu0 %v2001
    %2025 = vmatprep.subr.mxu0 0.0
    %2026 = vmatpush1.msra.mxu0 %v2002
    %2027 = vmatprep.subr.mxu0 0.0
    %2028 = vmatpush1.msra.mxu0 %v2003
    %2029 = vmatprep.subr.mxu0 0.0
    %2030 = vmatpush1.msra.mxu0 %v2004
    %2031 = vmatprep.subr.mxu0 0.0
    %2032 = vmatpush1.msra.mxu0 %v2005
    %2033 = vmatprep.subr.mxu0 0.0
    %2034 = vmatpush1.msra.mxu0 %v2006
    %2035 = vmatprep.subr.mxu0 0.0
    %2036 = vmatpush1.msra.mxu0 %v2007
    %2037 = vmatprep.subr.mxu0 0.0
    %2038 = vmatpush1.msra.mxu0 %v2008
    %2039 = vmatprep.subr.mxu0 0.0
    %2040 = vmatpush1.msra.mxu0 %v2009
    %2041 = vmatprep.subr.mxu0 0.0
    %2042 = vmatpush1.msra.mxu0 %v2010
    %2043 = vmatprep.subr.mxu0 0.0
    %2044 = vmatpush1.msra.mxu0 0.0
    %2045 = vmatprep.subr.mxu0 0.0
    %2046 = vmatpush1.msra.mxu0 0.0
    %2047 = vmatprep.subr.mxu0 0.0
    %2048 = vmatpush1.msra.mxu0 0.0
    %2049 = vmatprep.subr.mxu0 0.0
    %2050 = vmatpush1.msra.mxu0 0.0
    %2051 = vmatprep.subr.mxu0 0.0
    %2052 = vmatpush1.msra.mxu0 0.0
    %2053 = vmatprep.subr.mxu0 0.0
    %2054 = vmatpush1.msra.mxu0 0.0
    %2055 = vmatprep.subr.mxu0 0.0
    %2056 = vmatpush1.msra.mxu0 0.0
    %2057 = vmatprep.subr.mxu0 0.0
    %2058 = vmatpush1.msra.mxu0 0.0
    %2059 = vmatprep.subr.mxu0 0.0
    %2060 = vmatpush1.msra.mxu0 0.0
    %2061 = vmatprep.subr.mxu0 0.0
    %2062 = vmatpush1.msra.mxu0 0.0
    %2063 = vmatprep.subr.mxu0 0.0
    %2064 = vmatpush1.msra.mxu0 0.0
    %2065 = vmatprep.subr.mxu0 0.0
    %2066 = vmatpush1.msra.mxu0 0.0
    %2067 = vmatprep.subr.mxu0 0.0
    %2068 = vmatpush1.msra.mxu0 0.0
    %2069 = vmatprep.subr.mxu0 0.0
    %2070 = vmatpush1.msra.mxu0 0.0
    %2071 = vmatprep.subr.mxu0 0.0
    %2072 = vmatpush1.msra.mxu0 0.0
    %2073 = vmatprep.subr.mxu0 0.0
    %2074 = vmatpush1.msra.mxu0 0.0
    %2075 = vmatprep.mubr.f32.mxu0 0.0
    %2076 = vmatmul.mubr.f32.gmra.mrb[0].mxu0 %v1815
    %v2077 = vpop.f32.mrb[0].mxu0
    %v2078 = vadd.f32 0.0, %v2077
    %v2079 = vpop.f32.mrb[0].mxu0
    %2080 = vdwg.mxu0
    %v2081 = vadd.f32 %v1991, %v2078
    %s2082 = scalar_lea.vmem [#allocation10], 384
    %v2083 = vld [vmem:[%s2082] sm:$0xff]
    %v2084 = vld [vmem:[%s2082 + $0x8] sm:$0xff]
    %v2085 = vld [vmem:[%s2082 + $0x10] sm:$0xff]
    %v2086 = vld [vmem:[%s2082 + $0x18] sm:$0xff]
    %v2087 = vld [vmem:[%s2082 + $0x20] sm:$0xff]
    %v2088 = vld [vmem:[%s2082 + $0x28] sm:$0xff]
    %v2089 = vld [vmem:[%s2082 + $0x30] sm:$0xff]
    %v2090 = vld [vmem:[%s2082 + $0x38] sm:$0xff]
    %v2091 = vld [vmem:[%s2082 + $0x40] sm:$0xff]
    %v2092 = vld [vmem:[%s2082 + $0x48] sm:$0xff]
    %v2093 = vld [vmem:[%s2082 + $0x50] sm:$0xff]
    %v2094 = vld [vmem:[%s2082 + $0x58] sm:$0xff]
    %v2095 = vld [vmem:[%s2082 + $0x60] sm:$0xff]
    %v2096 = vld [vmem:[%s2082 + $0x68] sm:$0xff]
    %v2097 = vld [vmem:[%s2082 + $0x70] sm:$0xff]
    %v2098 = vld [vmem:[%s2082 + $0x78] sm:$0xff]
    %2099 = vmatprep.subr.mxu0 0.0
    %2100 = vmatpush1.msra.mxu0 %v2083
    %2101 = vmatprep.subr.mxu0 0.0
    %2102 = vmatpush1.msra.mxu0 %v2084
    %2103 = vmatprep.subr.mxu0 0.0
    %2104 = vmatpush1.msra.mxu0 %v2085
    %2105 = vmatprep.subr.mxu0 0.0
    %2106 = vmatpush1.msra.mxu0 %v2086
    %2107 = vmatprep.subr.mxu0 0.0
    %2108 = vmatpush1.msra.mxu0 %v2087
    %2109 = vmatprep.subr.mxu0 0.0
    %2110 = vmatpush1.msra.mxu0 %v2088
    %2111 = vmatprep.subr.mxu0 0.0
    %2112 = vmatpush1.msra.mxu0 %v2089
    %2113 = vmatprep.subr.mxu0 0.0
    %2114 = vmatpush1.msra.mxu0 %v2090
    %2115 = vmatprep.subr.mxu0 0.0
    %2116 = vmatpush1.msra.mxu0 %v2091
    %2117 = vmatprep.subr.mxu0 0.0
    %2118 = vmatpush1.msra.mxu0 %v2092
    %2119 = vmatprep.subr.mxu0 0.0
    %2120 = vmatpush1.msra.mxu0 %v2093
    %2121 = vmatprep.subr.mxu0 0.0
    %2122 = vmatpush1.msra.mxu0 %v2094
    %2123 = vmatprep.subr.mxu0 0.0
    %2124 = vmatpush1.msra.mxu0 %v2095
    %2125 = vmatprep.subr.mxu0 0.0
    %2126 = vmatpush1.msra.mxu0 %v2096
    %2127 = vmatprep.subr.mxu0 0.0
    %2128 = vmatpush1.msra.mxu0 %v2097
    %2129 = vmatprep.subr.mxu0 0.0
    %2130 = vmatpush1.msra.mxu0 %v2098
    %2131 = vmatprep.subr.mxu0 0.0
    %2132 = vmatpush1.msra.mxu0 0.0
    %2133 = vmatprep.subr.mxu0 0.0
    %2134 = vmatpush1.msra.mxu0 0.0
    %2135 = vmatprep.subr.mxu0 0.0
    %2136 = vmatpush1.msra.mxu0 0.0
    %2137 = vmatprep.subr.mxu0 0.0
    %2138 = vmatpush1.msra.mxu0 0.0
    %2139 = vmatprep.subr.mxu0 0.0
    %2140 = vmatpush1.msra.mxu0 0.0
    %2141 = vmatprep.subr.mxu0 0.0
    %2142 = vmatpush1.msra.mxu0 0.0
    %2143 = vmatprep.subr.mxu0 0.0
    %2144 = vmatpush1.msra.mxu0 0.0
    %2145 = vmatprep.subr.mxu0 0.0
    %2146 = vmatpush1.msra.mxu0 0.0
    %2147 = vmatprep.subr.mxu0 0.0
    %2148 = vmatpush1.msra.mxu0 0.0
    %2149 = vmatprep.subr.mxu0 0.0
    %2150 = vmatpush1.msra.mxu0 0.0
    %2151 = vmatprep.subr.mxu0 0.0
    %2152 = vmatpush1.msra.mxu0 0.0
    %2153 = vmatprep.subr.mxu0 0.0
    %2154 = vmatpush1.msra.mxu0 0.0
    %2155 = vmatprep.subr.mxu0 0.0
    %2156 = vmatpush1.msra.mxu0 0.0
    %2157 = vmatprep.subr.mxu0 0.0
    %2158 = vmatpush1.msra.mxu0 0.0
    %2159 = vmatprep.subr.mxu0 0.0
    %2160 = vmatpush1.msra.mxu0 0.0
    %2161 = vmatprep.subr.mxu0 0.0
    %2162 = vmatpush1.msra.mxu0 0.0
    %2163 = vmatprep.mubr.f32.mxu0 0.0
    %2164 = vmatmul.mubr.f32.gmra.mrb[0].mxu0 %v1816
    %v2165 = vpop.f32.mrb[0].mxu0
    %v2166 = vadd.f32 0.0, %v2165
    %v2167 = vpop.f32.mrb[0].mxu0
    %2168 = vdwg.mxu0
    %v2169 = vadd.f32 %v2081, %v2166
    %s2170 = scalar_lea.vmem [#allocation10], 512
    %v2171 = vld [vmem:[%s2170] sm:$0xff]
    %v2172 = vld [vmem:[%s2170 + $0x8] sm:$0xff]
    %v2173 = vld [vmem:[%s2170 + $0x10] sm:$0xff]
    %v2174 = vld [vmem:[%s2170 + $0x18] sm:$0xff]
    %v2175 = vld [vmem:[%s2170 + $0x20] sm:$0xff]
    %v2176 = vld [vmem:[%s2170 + $0x28] sm:$0xff]
    %v2177 = vld [vmem:[%s2170 + $0x30] sm:$0xff]
    %v2178 = vld [vmem:[%s2170 + $0x38] sm:$0xff]
    %v2179 = vld [vmem:[%s2170 + $0x40] sm:$0xff]
    %v2180 = vld [vmem:[%s2170 + $0x48] sm:$0xff]
    %v2181 = vld [vmem:[%s2170 + $0x50] sm:$0xff]
    %v2182 = vld [vmem:[%s2170 + $0x58] sm:$0xff]
    %v2183 = vld [vmem:[%s2170 + $0x60] sm:$0xff]
    %v2184 = vld [vmem:[%s2170 + $0x68] sm:$0xff]
    %v2185 = vld [vmem:[%s2170 + $0x70] sm:$0xff]
    %v2186 = vld [vmem:[%s2170 + $0x78] sm:$0xff]
    %2187 = vmatprep.subr.mxu0 0.0
    %2188 = vmatpush1.msra.mxu0 %v2171
    %2189 = vmatprep.subr.mxu0 0.0
    %2190 = vmatpush1.msra.mxu0 %v2172
    %2191 = vmatprep.subr.mxu0 0.0
    %2192 = vmatpush1.msra.mxu0 %v2173
    %2193 = vmatprep.subr.mxu0 0.0
    %2194 = vmatpush1.msra.mxu0 %v2174
    %2195 = vmatprep.subr.mxu0 0.0
    %2196 = vmatpush1.msra.mxu0 %v2175
    %2197 = vmatprep.subr.mxu0 0.0
    %2198 = vmatpush1.msra.mxu0 %v2176
    %2199 = vmatprep.subr.mxu0 0.0
    %2200 = vmatpush1.msra.mxu0 %v2177
    %2201 = vmatprep.subr.mxu0 0.0
    %2202 = vmatpush1.msra.mxu0 %v2178
    %2203 = vmatprep.subr.mxu0 0.0
    %2204 = vmatpush1.msra.mxu0 %v2179
    %2205 = vmatprep.subr.mxu0 0.0
    %2206 = vmatpush1.msra.mxu0 %v2180
    %2207 = vmatprep.subr.mxu0 0.0
    %2208 = vmatpush1.msra.mxu0 %v2181
    %2209 = vmatprep.subr.mxu0 0.0
    %2210 = vmatpush1.msra.mxu0 %v2182
    %2211 = vmatprep.subr.mxu0 0.0
    %2212 = vmatpush1.msra.mxu0 %v2183
    %2213 = vmatprep.subr.mxu0 0.0
    %2214 = vmatpush1.msra.mxu0 %v2184
    %2215 = vmatprep.subr.mxu0 0.0
    %2216 = vmatpush1.msra.mxu0 %v2185
    %2217 = vmatprep.subr.mxu0 0.0
    %2218 = vmatpush1.msra.mxu0 %v2186
    %2219 = vmatprep.subr.mxu0 0.0
    %2220 = vmatpush1.msra.mxu0 0.0
    %2221 = vmatprep.subr.mxu0 0.0
    %2222 = vmatpush1.msra.mxu0 0.0
    %2223 = vmatprep.subr.mxu0 0.0
    %2224 = vmatpush1.msra.mxu0 0.0
    %2225 = vmatprep.subr.mxu0 0.0
    %2226 = vmatpush1.msra.mxu0 0.0
    %2227 = vmatprep.subr.mxu0 0.0
    %2228 = vmatpush1.msra.mxu0 0.0
    %2229 = vmatprep.subr.mxu0 0.0
    %2230 = vmatpush1.msra.mxu0 0.0
    %2231 = vmatprep.subr.mxu0 0.0
    %2232 = vmatpush1.msra.mxu0 0.0
    %2233 = vmatprep.subr.mxu0 0.0
    %2234 = vmatpush1.msra.mxu0 0.0
    %2235 = vmatprep.subr.mxu0 0.0
    %2236 = vmatpush1.msra.mxu0 0.0
    %2237 = vmatprep.subr.mxu0 0.0
    %2238 = vmatpush1.msra.mxu0 0.0
    %2239 = vmatprep.subr.mxu0 0.0
    %2240 = vmatpush1.msra.mxu0 0.0
    %2241 = vmatprep.subr.mxu0 0.0
    %2242 = vmatpush1.msra.mxu0 0.0
    %2243 = vmatprep.subr.mxu0 0.0
    %2244 = vmatpush1.msra.mxu0 0.0
    %2245 = vmatprep.subr.mxu0 0.0
    %2246 = vmatpush1.msra.mxu0 0.0
    %2247 = vmatprep.subr.mxu0 0.0
    %2248 = vmatpush1.msra.mxu0 0.0
    %2249 = vmatprep.subr.mxu0 0.0
    %2250 = vmatpush1.msra.mxu0 0.0
    %2251 = vmatprep.mubr.f32.mxu0 0.0
    %2252 = vmatmul.mubr.f32.gmra.mrb[0].mxu0 %v1817
    %v2253 = vpop.f32.mrb[0].mxu0
    %v2254 = vadd.f32 0.0, %v2253
    %v2255 = vpop.f32.mrb[0].mxu0
    %2256 = vdwg.mxu0
    %v2257 = vadd.f32 %v2169, %v2254
    %s2258 = scalar_lea.vmem [#allocation10], 640
    %v2259 = vld [vmem:[%s2258] sm:$0xff]
    %v2260 = vld [vmem:[%s2258 + $0x8] sm:$0xff]
    %v2261 = vld [vmem:[%s2258 + $0x10] sm:$0xff]
    %v2262 = vld [vmem:[%s2258 + $0x18] sm:$0xff]
    %v2263 = vld [vmem:[%s2258 + $0x20] sm:$0xff]
    %v2264 = vld [vmem:[%s2258 + $0x28] sm:$0xff]
    %v2265 = vld [vmem:[%s2258 + $0x30] sm:$0xff]
    %v2266 = vld [vmem:[%s2258 + $0x38] sm:$0xff]
    %v2267 = vld [vmem:[%s2258 + $0x40] sm:$0xff]
    %v2268 = vld [vmem:[%s2258 + $0x48] sm:$0xff]
    %v2269 = vld [vmem:[%s2258 + $0x50] sm:$0xff]
    %v2270 = vld [vmem:[%s2258 + $0x58] sm:$0xff]
    %v2271 = vld [vmem:[%s2258 + $0x60] sm:$0xff]
    %v2272 = vld [vmem:[%s2258 + $0x68] sm:$0xff]
    %v2273 = vld [vmem:[%s2258 + $0x70] sm:$0xff]
    %v2274 = vld [vmem:[%s2258 + $0x78] sm:$0xff]
    %2275 = vmatprep.subr.mxu0 0.0
    %2276 = vmatpush1.msra.mxu0 %v2259
    %2277 = vmatprep.subr.mxu0 0.0
    %2278 = vmatpush1.msra.mxu0 %v2260
    %2279 = vmatprep.subr.mxu0 0.0
    %2280 = vmatpush1.msra.mxu0 %v2261
    %2281 = vmatprep.subr.mxu0 0.0
    %2282 = vmatpush1.msra.mxu0 %v2262
    %2283 = vmatprep.subr.mxu0 0.0
    %2284 = vmatpush1.msra.mxu0 %v2263
    %2285 = vmatprep.subr.mxu0 0.0
    %2286 = vmatpush1.msra.mxu0 %v2264
    %2287 = vmatprep.subr.mxu0 0.0
    %2288 = vmatpush1.msra.mxu0 %v2265
    %2289 = vmatprep.subr.mxu0 0.0
    %2290 = vmatpush1.msra.mxu0 %v2266
    %2291 = vmatprep.subr.mxu0 0.0
    %2292 = vmatpush1.msra.mxu0 %v2267
    %2293 = vmatprep.subr.mxu0 0.0
    %2294 = vmatpush1.msra.mxu0 %v2268
    %2295 = vmatprep.subr.mxu0 0.0
    %2296 = vmatpush1.msra.mxu0 %v2269
    %2297 = vmatprep.subr.mxu0 0.0
    %2298 = vmatpush1.msra.mxu0 %v2270
    %2299 = vmatprep.subr.mxu0 0.0
    %2300 = vmatpush1.msra.mxu0 %v2271
    %2301 = vmatprep.subr.mxu0 0.0
    %2302 = vmatpush1.msra.mxu0 %v2272
    %2303 = vmatprep.subr.mxu0 0.0
    %2304 = vmatpush1.msra.mxu0 %v2273
    %2305 = vmatprep.subr.mxu0 0.0
    %2306 = vmatpush1.msra.mxu0 %v2274
    %2307 = vmatprep.subr.mxu0 0.0
    %2308 = vmatpush1.msra.mxu0 0.0
    %2309 = vmatprep.subr.mxu0 0.0
    %2310 = vmatpush1.msra.mxu0 0.0
    %2311 = vmatprep.subr.mxu0 0.0
    %2312 = vmatpush1.msra.mxu0 0.0
    %2313 = vmatprep.subr.mxu0 0.0
    %2314 = vmatpush1.msra.mxu0 0.0
    %2315 = vmatprep.subr.mxu0 0.0
    %2316 = vmatpush1.msra.mxu0 0.0
    %2317 = vmatprep.subr.mxu0 0.0
    %2318 = vmatpush1.msra.mxu0 0.0
    %2319 = vmatprep.subr.mxu0 0.0
    %2320 = vmatpush1.msra.mxu0 0.0
    %2321 = vmatprep.subr.mxu0 0.0
    %2322 = vmatpush1.msra.mxu0 0.0
    %2323 = vmatprep.subr.mxu0 0.0
    %2324 = vmatpush1.msra.mxu0 0.0
    %2325 = vmatprep.subr.mxu0 0.0
    %2326 = vmatpush1.msra.mxu0 0.0
    %2327 = vmatprep.subr.mxu0 0.0
    %2328 = vmatpush1.msra.mxu0 0.0
    %2329 = vmatprep.subr.mxu0 0.0
    %2330 = vmatpush1.msra.mxu0 0.0
    %2331 = vmatprep.subr.mxu0 0.0
    %2332 = vmatpush1.msra.mxu0 0.0
    %2333 = vmatprep.subr.mxu0 0.0
    %2334 = vmatpush1.msra.mxu0 0.0
    %2335 = vmatprep.subr.mxu0 0.0
    %2336 = vmatpush1.msra.mxu0 0.0
    %2337 = vmatprep.subr.mxu0 0.0
    %2338 = vmatpush1.msra.mxu0 0.0
    %2339 = vmatprep.mubr.f32.mxu0 0.0
    %2340 = vmatmul.mubr.f32.gmra.mrb[0].mxu0 %v1818
    %v2341 = vpop.f32.mrb[0].mxu0
    %v2342 = vadd.f32 0.0, %v2341
    %v2343 = vpop.f32.mrb[0].mxu0
    %2344 = vdwg.mxu0
    %v2345 = vadd.f32 %v2257, %v2342
    %s2346 = scalar_lea.vmem [#allocation10], 768
    %v2347 = vld [vmem:[%s2346] sm:$0xff]
    %v2348 = vld [vmem:[%s2346 + $0x8] sm:$0xff]
    %v2349 = vld [vmem:[%s2346 + $0x10] sm:$0xff]
    %v2350 = vld [vmem:[%s2346 + $0x18] sm:$0xff]
    %v2351 = vld [vmem:[%s2346 + $0x20] sm:$0xff]
    %v2352 = vld [vmem:[%s2346 + $0x28] sm:$0xff]
    %v2353 = vld [vmem:[%s2346 + $0x30] sm:$0xff]
    %v2354 = vld [vmem:[%s2346 + $0x38] sm:$0xff]
    %v2355 = vld [vmem:[%s2346 + $0x40] sm:$0xff]
    %v2356 = vld [vmem:[%s2346 + $0x48] sm:$0xff]
    %v2357 = vld [vmem:[%s2346 + $0x50] sm:$0xff]
    %v2358 = vld [vmem:[%s2346 + $0x58] sm:$0xff]
    %v2359 = vld [vmem:[%s2346 + $0x60] sm:$0xff]
    %v2360 = vld [vmem:[%s2346 + $0x68] sm:$0xff]
    %v2361 = vld [vmem:[%s2346 + $0x70] sm:$0xff]
    %v2362 = vld [vmem:[%s2346 + $0x78] sm:$0xff]
    %2363 = vmatprep.subr.mxu0 0.0
    %2364 = vmatpush1.msra.mxu0 %v2347
    %2365 = vmatprep.subr.mxu0 0.0
    %2366 = vmatpush1.msra.mxu0 %v2348
    %2367 = vmatprep.subr.mxu0 0.0
    %2368 = vmatpush1.msra.mxu0 %v2349
    %2369 = vmatprep.subr.mxu0 0.0
    %2370 = vmatpush1.msra.mxu0 %v2350
    %2371 = vmatprep.subr.mxu0 0.0
    %2372 = vmatpush1.msra.mxu0 %v2351
    %2373 = vmatprep.subr.mxu0 0.0
    %2374 = vmatpush1.msra.mxu0 %v2352
    %2375 = vmatprep.subr.mxu0 0.0
    %2376 = vmatpush1.msra.mxu0 %v2353
    %2377 = vmatprep.subr.mxu0 0.0
    %2378 = vmatpush1.msra.mxu0 %v2354
    %2379 = vmatprep.subr.mxu0 0.0
    %2380 = vmatpush1.msra.mxu0 %v2355
    %2381 = vmatprep.subr.mxu0 0.0
    %2382 = vmatpush1.msra.mxu0 %v2356
    %2383 = vmatprep.subr.mxu0 0.0
    %2384 = vmatpush1.msra.mxu0 %v2357
    %2385 = vmatprep.subr.mxu0 0.0
    %2386 = vmatpush1.msra.mxu0 %v2358
    %2387 = vmatprep.subr.mxu0 0.0
    %2388 = vmatpush1.msra.mxu0 %v2359
    %2389 = vmatprep.subr.mxu0 0.0
    %2390 = vmatpush1.msra.mxu0 %v2360
    %2391 = vmatprep.subr.mxu0 0.0
    %2392 = vmatpush1.msra.mxu0 %v2361
    %2393 = vmatprep.subr.mxu0 0.0
    %2394 = vmatpush1.msra.mxu0 %v2362
    %2395 = vmatprep.subr.mxu0 0.0
    %2396 = vmatpush1.msra.mxu0 0.0
    %2397 = vmatprep.subr.mxu0 0.0
    %2398 = vmatpush1.msra.mxu0 0.0
    %2399 = vmatprep.subr.mxu0 0.0
    %2400 = vmatpush1.msra.mxu0 0.0
    %2401 = vmatprep.subr.mxu0 0.0
    %2402 = vmatpush1.msra.mxu0 0.0
    %2403 = vmatprep.subr.mxu0 0.0
    %2404 = vmatpush1.msra.mxu0 0.0
    %2405 = vmatprep.subr.mxu0 0.0
    %2406 = vmatpush1.msra.mxu0 0.0
    %2407 = vmatprep.subr.mxu0 0.0
    %2408 = vmatpush1.msra.mxu0 0.0
    %2409 = vmatprep.subr.mxu0 0.0
    %2410 = vmatpush1.msra.mxu0 0.0
    %2411 = vmatprep.subr.mxu0 0.0
    %2412 = vmatpush1.msra.mxu0 0.0
    %2413 = vmatprep.subr.mxu0 0.0
    %2414 = vmatpush1.msra.mxu0 0.0
    %2415 = vmatprep.subr.mxu0 0.0
    %2416 = vmatpush1.msra.mxu0 0.0
    %2417 = vmatprep.subr.mxu0 0.0
    %2418 = vmatpush1.msra.mxu0 0.0
    %2419 = vmatprep.subr.mxu0 0.0
    %2420 = vmatpush1.msra.mxu0 0.0
    %2421 = vmatprep.subr.mxu0 0.0
    %2422 = vmatpush1.msra.mxu0 0.0
    %2423 = vmatprep.subr.mxu0 0.0
    %2424 = vmatpush1.msra.mxu0 0.0
    %2425 = vmatprep.subr.mxu0 0.0
    %2426 = vmatpush1.msra.mxu0 0.0
    %2427 = vmatprep.mubr.f32.mxu0 0.0
    %2428 = vmatmul.mubr.f32.gmra.mrb[0].mxu0 %v1819
    %v2429 = vpop.f32.mrb[0].mxu0
    %v2430 = vadd.f32 0.0, %v2429
    %v2431 = vpop.f32.mrb[0].mxu0
    %2432 = vdwg.mxu0
    %v2433 = vadd.f32 %v2345, %v2430
    %s2434 = scalar_lea.vmem [#allocation10], 896
    %v2435 = vld [vmem:[%s2434] sm:$0xff]
    %v2436 = vld [vmem:[%s2434 + $0x8] sm:$0xff]
    %v2437 = vld [vmem:[%s2434 + $0x10] sm:$0xff]
    %v2438 = vld [vmem:[%s2434 + $0x18] sm:$0xff]
    %v2439 = vld [vmem:[%s2434 + $0x20] sm:$0xff]
    %v2440 = vld [vmem:[%s2434 + $0x28] sm:$0xff]
    %v2441 = vld [vmem:[%s2434 + $0x30] sm:$0xff]
    %v2442 = vld [vmem:[%s2434 + $0x38] sm:$0xff]
    %v2443 = vld [vmem:[%s2434 + $0x40] sm:$0xff]
    %v2444 = vld [vmem:[%s2434 + $0x48] sm:$0xff]
    %v2445 = vld [vmem:[%s2434 + $0x50] sm:$0xff]
    %v2446 = vld [vmem:[%s2434 + $0x58] sm:$0xff]
    %v2447 = vld [vmem:[%s2434 + $0x60] sm:$0xff]
    %v2448 = vld [vmem:[%s2434 + $0x68] sm:$0xff]
    %v2449 = vld [vmem:[%s2434 + $0x70] sm:$0xff]
    %v2450 = vld [vmem:[%s2434 + $0x78] sm:$0xff]
    %2451 = vmatprep.subr.mxu0 0.0
    %2452 = vmatpush1.msra.mxu0 %v2435
    %2453 = vmatprep.subr.mxu0 0.0
    %2454 = vmatpush1.msra.mxu0 %v2436
    %2455 = vmatprep.subr.mxu0 0.0
    %2456 = vmatpush1.msra.mxu0 %v2437
    %2457 = vmatprep.subr.mxu0 0.0
    %2458 = vmatpush1.msra.mxu0 %v2438
    %2459 = vmatprep.subr.mxu0 0.0
    %2460 = vmatpush1.msra.mxu0 %v2439
    %2461 = vmatprep.subr.mxu0 0.0
    %2462 = vmatpush1.msra.mxu0 %v2440
    %2463 = vmatprep.subr.mxu0 0.0
    %2464 = vmatpush1.msra.mxu0 %v2441
    %2465 = vmatprep.subr.mxu0 0.0
    %2466 = vmatpush1.msra.mxu0 %v2442
    %2467 = vmatprep.subr.mxu0 0.0
    %2468 = vmatpush1.msra.mxu0 %v2443
    %2469 = vmatprep.subr.mxu0 0.0
    %2470 = vmatpush1.msra.mxu0 %v2444
    %2471 = vmatprep.subr.mxu0 0.0
    %2472 = vmatpush1.msra.mxu0 %v2445
    %2473 = vmatprep.subr.mxu0 0.0
    %2474 = vmatpush1.msra.mxu0 %v2446
    %2475 = vmatprep.subr.mxu0 0.0
    %2476 = vmatpush1.msra.mxu0 %v2447
    %2477 = vmatprep.subr.mxu0 0.0
    %2478 = vmatpush1.msra.mxu0 %v2448
    %2479 = vmatprep.subr.mxu0 0.0
    %2480 = vmatpush1.msra.mxu0 %v2449
    %2481 = vmatprep.subr.mxu0 0.0
    %2482 = vmatpush1.msra.mxu0 %v2450
    %2483 = vmatprep.subr.mxu0 0.0
    %2484 = vmatpush1.msra.mxu0 0.0
    %2485 = vmatprep.subr.mxu0 0.0
    %2486 = vmatpush1.msra.mxu0 0.0
    %2487 = vmatprep.subr.mxu0 0.0
    %2488 = vmatpush1.msra.mxu0 0.0
    %2489 = vmatprep.subr.mxu0 0.0
    %2490 = vmatpush1.msra.mxu0 0.0
    %2491 = vmatprep.subr.mxu0 0.0
    %2492 = vmatpush1.msra.mxu0 0.0
    %2493 = vmatprep.subr.mxu0 0.0
    %2494 = vmatpush1.msra.mxu0 0.0
    %2495 = vmatprep.subr.mxu0 0.0
    %2496 = vmatpush1.msra.mxu0 0.0
    %2497 = vmatprep.subr.mxu0 0.0
    %2498 = vmatpush1.msra.mxu0 0.0
    %2499 = vmatprep.subr.mxu0 0.0
    %2500 = vmatpush1.msra.mxu0 0.0
    %2501 = vmatprep.subr.mxu0 0.0
    %2502 = vmatpush1.msra.mxu0 0.0
    %2503 = vmatprep.subr.mxu0 0.0
    %2504 = vmatpush1.msra.mxu0 0.0
    %2505 = vmatprep.subr.mxu0 0.0
    %2506 = vmatpush1.msra.mxu0 0.0
    %2507 = vmatprep.subr.mxu0 0.0
    %2508 = vmatpush1.msra.mxu0 0.0
    %2509 = vmatprep.subr.mxu0 0.0
    %2510 = vmatpush1.msra.mxu0 0.0
    %2511 = vmatprep.subr.mxu0 0.0
    %2512 = vmatpush1.msra.mxu0 0.0
    %2513 = vmatprep.subr.mxu0 0.0
    %2514 = vmatpush1.msra.mxu0 0.0
    %2515 = vmatprep.mubr.f32.mxu0 0.0
    %2516 = vmatmul.mubr.f32.gmra.mrb[0].mxu0 %v1820
    %v2517 = vpop.f32.mrb[0].mxu0
    %v2518 = vadd.f32 0.0, %v2517
    %v2519 = vpop.f32.mrb[0].mxu0
    %2520 = vdwg.mxu0
    %v2521 = vadd.f32 %v2433, %v2518
    %2522 = vst [vmem:[#allocation11] sm:$0xff] %v2521
    // Predicated region
    $region42: #{encoder_forward.1} parent=1 // pred_check
      _
    $region43: #{encoder_forward.1} parent=1 // pred_check_branch
      %2524 = sbr.rel (0) target = $region45
    $region44: #{encoder_forward.1} parent=1 // pred_region
      %s2526 = ssub.s32 128, 128
      %2527 = vsyncadd [#allocation4], %s2526
      %s2529 = sshll.u32 [#allocation11], 4
      %s2530 = int_to_ptr.vmem [resolvable:$true] %s2529
      %2532 = dma.vmem_to_hbm [thread:$0]  %s2530, 128, %s5, [#allocation4]
    $region45: #{encoder_forward.1} parent=1 // pred_fallthru
      _
    // Predicated region
    $region46: #{encoder_forward.1} parent=1 // pred_check
      _
    $region47: #{encoder_forward.1} parent=1 // pred_check_branch
      %2534 = sbr.rel (0) target = $region49
    $region48: #{encoder_forward.1} parent=1 // pred_region
      %2535 = dma.done [#allocation4], 128
    $region49: #{encoder_forward.1} parent=1 // pred_fallthru
      _
    %2536 = vsyncpa [#allocation3], 1
    %2537 = vsyncpa [#allocation6], 1
    %2538 = vsyncpa [#allocation9], 1
    %2539 = vsyncpa [#allocation4], 1

</llo_original>
